<compile_context>
chip_gen: v7x
topology: tpu7x:2x2x1
jax: 0.10.0
libtpu: 0.0.40
codegen_flags: <defaults>
</compile_context>

<pallas_src>
import numpy as np
import jax
import jax.numpy as jnp
from jax import lax
from jax.experimental import pallas as pl
from jax.experimental.pallas import tpu as pltpu

EPS = 1e-5


# ----------------------------- Pallas kernel ------------------------------ #
def _make_kernel(Bt, L, Cmid, Cout, out_len):
    BtL = Bt * L

    def conv3_im2col(h, w_ref, bias):
        # h: (Bt*L, Ci) channels-last; rows of batch element b occupy [b*L, (b+1)*L).
        # kernel_size=3, stride=1, padding=1. The L shifts are a single sublane roll over
        # all Bt*L rows; rows that bleed across batch-element boundaries are exactly the
        # rows the conv's zero padding zeroes, so a cheap iota mask fixes them up.
        n = h.shape[0]
        prev = pltpu.roll(h, shift=1, axis=0)           # prev[r] = h[r - 1]
        nxt = pltpu.roll(h, shift=n - 1, axis=0)        # nxt[r]  = h[r + 1]
        pos = lax.broadcasted_iota(jnp.int32, h.shape, 0) % L
        prev = jnp.where(pos == 0, 0.0, prev)           # left zero pad of each element
        nxt = jnp.where(pos == L - 1, 0.0, nxt)         # right zero pad of each element
        xim = jnp.concatenate([prev, h, nxt], axis=-1)  # (Bt*L, 3*Ci)  im2col
        y = jnp.dot(xim, w_ref[...], preferred_element_type=jnp.float32)   # one MXU push
        return y + bias                                  # bias: (1, Co), broadcasts over rows

    def gn_elu(y, C, gbig_ref, gamma, beta, r_ref, s_ref):
        # Per-batch-element GroupNorm (stats over channels-in-group x L) + affine + ELU.
        # All 2D: stats = R @ [y | y*y]  (both moments, one push), group-avg via block-diag
        # Gbig, then a 0/1 selector matmul broadcasts per-element scale/shift back to rows.
        m = jnp.concatenate([y, y * y], axis=-1)                               # (BtL, 2C)
        stats = jnp.dot(r_ref[...], m, preferred_element_type=jnp.float32)     # (Bt, 2C) [mu|E[x^2]]
        stats_g = jnp.dot(stats, gbig_ref[...], preferred_element_type=jnp.float32)
        mu_g = stats_g[:, :C]                                                  # (Bt, C)
        var_g = stats_g[:, C:] - mu_g * mu_g                                   # biased variance
        inv = lax.rsqrt(var_g + EPS)
        scale = inv * gamma                                                    # (Bt, C)
        shift = beta - mu_g * scale
        ss = jnp.concatenate([scale, shift], axis=-1)                          # (Bt, 2C)
        ss_full = jnp.dot(s_ref[...], ss, preferred_element_type=jnp.float32)  # (BtL, 2C)
        h = y * ss_full[:, :C] + ss_full[:, C:]
        return jnp.where(h > 0, h, jnp.exp(h) - 1.0)                           # ELU(alpha=1)

    def kernel(x_ref, w1_ref, p1_ref, g1_ref, w2_ref, p2_ref, g2_ref,
               r_ref, s_ref, pt_ref, out_ref):
        x = x_ref[...]                                                         # (Bt*L, Cin)
        h1 = gn_elu(conv3_im2col(x, w1_ref, p1_ref[0:1, :]), Cmid, g1_ref,
                    p1_ref[1:2, :], p1_ref[2:3, :], r_ref, s_ref)              # (Bt*L, Cmid)
        h2 = gn_elu(conv3_im2col(h1, w2_ref, p2_ref[0:1, :]), Cout, g2_ref,
                    p2_ref[1:2, :], p2_ref[2:3, :], r_ref, s_ref)              # (Bt*L, Cout)

        # AdaptiveAvgPool1d: one batched matmul against the precomputed (out_len, L) matrix,
        # then a single batch-blocked store.
        h2_3d = h2.reshape(Bt, L, Cout)
        pt_b = jnp.broadcast_to(pt_ref[...], (Bt, out_len, L))
        pooled = jnp.einsum("bol,blc->boc", pt_b, h2_3d,
                            preferred_element_type=jnp.float32)                # (Bt, out_len, Cout)
        out_ref[...] = pooled

    return kernel


# ------------------------------- helpers ----------------------------------- #
def _adaptive_pool_matrix_t(L, out_len):
    # PyTorch AdaptiveAvgPool1d bin edges: start=floor(i*L/O), end=ceil((i+1)*L/O). Returns P^T.
    P = np.zeros((out_len, L), np.float32)
    for i in range(out_len):
        s = (i * L) // out_len
        e = -((-(i + 1) * L) // out_len)
        P[i, s:e] = 1.0 / (e - s)
    return P


def _group_avg_big(C, G):
    # Block-diagonal [Gavg, 0; 0, Gavg] so mean and second-moment are group-averaged in one matmul.
    gs = C // G
    M = np.zeros((C, C), np.float32)
    for g in range(G):
        M[g * gs:(g + 1) * gs, g * gs:(g + 1) * gs] = 1.0 / gs
    big = np.zeros((2 * C, 2 * C), np.float32)
    big[:C, :C] = M
    big[C:, C:] = M
    return big


def _row_avg_and_selector(Bt, L):
    # S[r, b] = 1 iff row r belongs to batch element b; R = S^T / L (per-element row average).
    S = np.kron(np.eye(Bt, dtype=np.float32), np.ones((L, 1), np.float32))   # (Bt*L, Bt)
    R = S.T / float(L)                                                       # (Bt, Bt*L)
    return R, S


# ------------------------------- wrapper ------------------------------------ #
def conv_encoder_with_gn(x, params, out_len, block_batch=None):
    """x: (B, Cin, L) float32 (PyTorch NCL). Returns (B, Cout, out_len)."""
    B, Cin, L = x.shape
    w1, b1, gamma1, beta1 = params["w1"], params["b1"], params["gamma1"], params["beta1"]
    w2, b2, gamma2, beta2 = params["w2"], params["b2"], params["gamma2"], params["beta2"]
    Cmid, Cout = w1.shape[0], w2.shape[0]

    # The kernel flattens (batch-block, L) onto the sublane axis; keep that layout clean.
    assert L % 8 == 0, "L must be a multiple of 8 for the flattened-row layout"

    # Batch elements per grid step: amortize the ~0.35us/step overhead, fill MXU M-dim.
    if block_batch is None:
        block_batch = max(d for d in range(1, min(B, 8) + 1) if B % d == 0)
    Bt = block_batch
    assert B % Bt == 0

    # Channels-last, flattened rows: row b*L + l <-> (batch b, position l).
    x_flat = jnp.transpose(x, (0, 2, 1)).reshape(B * L, Cin).astype(jnp.float32)
    # im2col conv weights: PyTorch (Co, Ci, 3) -> (3, Ci, Co) -> (3*Ci, Co); rows = [prev|center|next].
    w1_k = jnp.transpose(w1, (2, 1, 0)).reshape(3 * Cin, Cmid)
    w2_k = jnp.transpose(w2, (2, 1, 0)).reshape(3 * Cmid, Cout)
    p1 = jnp.stack([b1, gamma1, beta1], axis=0)            # (3, Cmid): bias / gamma / beta
    p2 = jnp.stack([b2, gamma2, beta2], axis=0)            # (3, Cout)
    g1 = jnp.asarray(_group_avg_big(Cmid, 8))              # (2*Cmid, 2*Cmid)
    g2 = jnp.asarray(_group_avg_big(Cout, 16))             # (2*Cout, 2*Cout)
    R, S = _row_avg_and_selector(Bt, L)
    pt = jnp.asarray(_adaptive_pool_matrix_t(L, out_len))  # (out_len, L)

    kernel = _make_kernel(Bt, L, Cmid, Cout, out_len)
    full = lambda shape: pl.BlockSpec(shape, lambda b: tuple(0 for _ in shape))

    out = pl.pallas_call(
        kernel,
        out_shape=jax.ShapeDtypeStruct((B, out_len, Cout), jnp.float32),
        grid=(B // Bt,),
        in_specs=[
            pl.BlockSpec((Bt * L, Cin), lambda b: (b, 0)),   # x rows of this batch block
            full((3 * Cin, Cmid)),                           # conv1 im2col weight
            full((3, Cmid)),                                 # conv1 bias / gn1 gamma,beta
            full((2 * Cmid, 2 * Cmid)),                      # gn1 group-average (mu|e2) matrix
            full((3 * Cmid, Cout)),                          # conv2 im2col weight
            full((3, Cout)),                                 # conv2 bias / gn2 gamma,beta
            full((2 * Cout, 2 * Cout)),                      # gn2 group-average matrix
            full((Bt, Bt * L)),                              # R: per-element row-average
            full((Bt * L, Bt)),                              # S: per-element row-selector
            full((out_len, L)),                              # adaptive-pool matrix P^T
        ],
        out_specs=pl.BlockSpec((Bt, out_len, Cout), lambda b: (b, 0, 0)),
        compiler_params=pltpu.CompilerParams(dimension_semantics=("parallel",)),
    )(x_flat, w1_k, p1, g1, w2_k, p2, g2, jnp.asarray(R), jnp.asarray(S), pt)

    # TODO(synk): bf16 matmul path (f32 accumulation) for large L/C on v6e/v7x is left out at
    # this toy size where the kernel is overhead-bound, not MXU-bound.
    return jnp.transpose(out, (0, 2, 1))                    # back to (B, Cout, out_len)


# --------------------------- pure-JAX reference ----------------------------- #
def _ref_forward(x, p, out_len):
    def conv1d(h, w, b):
        y = lax.conv_general_dilated(h, w, window_strides=(1,), padding=((1, 1),),
                                     dimension_numbers=("NCH", "OIH", "NCH"))
        return y + b[None, :, None]

    def gn(h, gamma, beta, G):
        B, C, L = h.shape
        hr = h.reshape(B, G, (C // G) * L)
        mu = hr.mean(axis=2, keepdims=True)
        var = ((hr - mu) ** 2).mean(axis=2, keepdims=True)
        hn = ((hr - mu) / jnp.sqrt(var + EPS)).reshape(B, C, L)
        return hn * gamma[None, :, None] + beta[None, :, None]

    def elu(h):
        return jnp.where(h > 0, h, jnp.exp(h) - 1.0)

    h = elu(gn(conv1d(x, p["w1"], p["b1"]), p["gamma1"], p["beta1"], 8))
    h = elu(gn(conv1d(h, p["w2"], p["b2"]), p["gamma2"], p["beta2"], 16))
    pt = jnp.asarray(_adaptive_pool_matrix_t(h.shape[2], out_len))
    return jnp.einsum("bcl,ol->bco", h, pt)


# --------------------------------- main -------------------------------------- #
if __name__ == "__main__":
    B, in_channels, out_channels, L, out_len = 2, 4, 32, 16, 8
    Cmid = out_channels // 2

    key = jax.random.PRNGKey(0)
    ks = jax.random.split(key, 9)
    params = {
        "w1": 0.2 * jax.random.normal(ks[0], (Cmid, in_channels, 3), jnp.float32),
        "b1": 0.1 * jax.random.normal(ks[1], (Cmid,), jnp.float32),
        "gamma1": 1.0 + 0.1 * jax.random.normal(ks[2], (Cmid,), jnp.float32),
        "beta1": 0.1 * jax.random.normal(ks[3], (Cmid,), jnp.float32),
        "w2": 0.2 * jax.random.normal(ks[4], (out_channels, Cmid, 3), jnp.float32),
        "b2": 0.1 * jax.random.normal(ks[5], (out_channels,), jnp.float32),
        "gamma2": 1.0 + 0.1 * jax.random.normal(ks[6], (out_channels,), jnp.float32),
        "beta2": 0.1 * jax.random.normal(ks[7], (out_channels,), jnp.float32),
    }
    x = jax.random.normal(ks[8], (B, in_channels, L), jnp.float32)

    out = jax.block_until_ready(conv_encoder_with_gn(x, params, out_len))
    ref = jax.block_until_ready(_ref_forward(x, params, out_len))

    assert out.shape == (B, out_channels, out_len), out.shape
    np.testing.assert_allclose(np.asarray(out), np.asarray(ref), rtol=1e-4, atol=1e-4)
    print("KERNEL_OK")
</pallas_src>

<mosaic_0001>
module attributes {stable_mosaic.version = 11 : i64} {
  func.func @kernel(%arg0: i32, %arg1: memref<32x4xf32, #tpu.memory_space<vmem>>, %arg2: memref<12x16xf32, #tpu.memory_space<vmem>>, %arg3: memref<3x16xf32, #tpu.memory_space<vmem>>, %arg4: memref<32x32xf32, #tpu.memory_space<vmem>>, %arg5: memref<48x32xf32, #tpu.memory_space<vmem>>, %arg6: memref<3x32xf32, #tpu.memory_space<vmem>>, %arg7: memref<64x64xf32, #tpu.memory_space<vmem>>, %arg8: memref<2x32xf32, #tpu.memory_space<vmem>>, %arg9: memref<32x2xf32, #tpu.memory_space<vmem>>, %arg10: memref<8x16xf32, #tpu.memory_space<vmem>>, %arg11: memref<2x8x32xf32, #tpu.memory_space<vmem>>) attributes {dimension_semantics = [#tpu.dimension_semantics<parallel>], iteration_bounds = array<i64: 1>, scalar_prefetch = 0 : i64, scratch_operands = 0 : i64, tpu.core_type = #tpu.core_type<tc>, window_params = [{transform_indices = @transform_0, window_bounds = array<i64: 32, 4>}, {pipeline_mode = #tpu.pipeline_mode<synchronous>, transform_indices = @transform_1, window_bounds = array<i64: 12, 16>}, {pipeline_mode = #tpu.pipeline_mode<synchronous>, transform_indices = @transform_2, window_bounds = array<i64: 3, 16>}, {pipeline_mode = #tpu.pipeline_mode<synchronous>, transform_indices = @transform_3, window_bounds = array<i64: 32, 32>}, {pipeline_mode = #tpu.pipeline_mode<synchronous>, transform_indices = @transform_4, window_bounds = array<i64: 48, 32>}, {pipeline_mode = #tpu.pipeline_mode<synchronous>, transform_indices = @transform_5, window_bounds = array<i64: 3, 32>}, {pipeline_mode = #tpu.pipeline_mode<synchronous>, transform_indices = @transform_6, window_bounds = array<i64: 64, 64>}, {pipeline_mode = #tpu.pipeline_mode<synchronous>, transform_indices = @transform_7, window_bounds = array<i64: 2, 32>}, {pipeline_mode = #tpu.pipeline_mode<synchronous>, transform_indices = @transform_8, window_bounds = array<i64: 32, 2>}, {pipeline_mode = #tpu.pipeline_mode<synchronous>, transform_indices = @transform_9, window_bounds = array<i64: 8, 16>}, {transform_indices = @transform_10, window_bounds = array<i64: 2, 8, 32>}]} {
    %c0 = arith.constant 0 : index
    %c0_0 = arith.constant 0 : index
    %0 = vector.load %arg1[%c0, %c0_0] : memref<32x4xf32, #tpu.memory_space<vmem>>, vector<32x4xf32>
    %c0_1 = arith.constant 0 : index
    %c0_2 = arith.constant 0 : index
    %1 = vector.load %arg3[%c0_1, %c0_2] : memref<3x16xf32, #tpu.memory_space<vmem>>, vector<1x16xf32>
    %c1_i32 = arith.constant 1 : i32
    %2 = tpu.dynamic_rotate %0 by %c1_i32 dim 0 : vector<32x4xf32>, i32 -> vector<32x4xf32>
    %c31_i32 = arith.constant 31 : i32
    %3 = tpu.dynamic_rotate %0 by %c31_i32 dim 0 : vector<32x4xf32>, i32 -> vector<32x4xf32>
    %4 = tpu.iota {dimensions = array<i32: 0>} : vector<32x4xi32>
    %c16_i32 = arith.constant 16 : i32
    %c0_i32 = arith.constant 0 : i32
    %5 = arith.cmpi eq, %c16_i32, %c0_i32 : i32
    %c1_i32_3 = arith.constant 1 : i32
    %6 = arith.select %5, %c1_i32_3, %c16_i32 : i32
    %7 = vector.broadcast %6 : i32 to vector<32x4xi32>
    %8 = arith.remsi %4, %7 : vector<32x4xi32>
    %c0_i32_4 = arith.constant 0 : i32
    %9 = vector.broadcast %c0_i32_4 : i32 to vector<32x4xi32>
    %10 = arith.cmpi ne, %8, %9 : vector<32x4xi32>
    %c0_i32_5 = arith.constant 0 : i32
    %11 = vector.broadcast %c0_i32_5 : i32 to vector<32x4xi32>
    %12 = arith.cmpi slt, %8, %11 : vector<32x4xi32>
    %c0_i32_6 = arith.constant 0 : i32
    %13 = arith.cmpi slt, %6, %c0_i32_6 : i32
    %14 = vector.broadcast %13 : i1 to vector<32x4xi1>
    %15 = vector.broadcast %14 : vector<32x4xi1> to vector<32x4xi1>
    %16 = arith.xori %12, %15 : vector<32x4xi1>
    %17 = arith.andi %16, %10 : vector<32x4xi1>
    %18 = vector.broadcast %6 : i32 to vector<32x4xi32>
    %19 = arith.addi %8, %18 : vector<32x4xi32>
    %20 = arith.select %17, %19, %8 : vector<32x4xi1>, vector<32x4xi32>
    %c0_i32_7 = arith.constant 0 : i32
    %21 = vector.broadcast %c0_i32_7 : i32 to vector<32x4xi32>
    %22 = arith.cmpi eq, %20, %21 : vector<32x4xi32>
    %cst = arith.constant 0.000000e+00 : f32
    %23 = vector.broadcast %cst : f32 to vector<32x4xf32>
    %24 = arith.select %22, %23, %2 : vector<32x4xi1>, vector<32x4xf32>
    %c15_i32 = arith.constant 15 : i32
    %25 = vector.broadcast %c15_i32 : i32 to vector<32x4xi32>
    %26 = arith.cmpi eq, %20, %25 : vector<32x4xi32>
    %cst_8 = arith.constant 0.000000e+00 : f32
    %27 = vector.broadcast %cst_8 : f32 to vector<32x4xf32>
    %28 = arith.select %26, %27, %3 : vector<32x4xi1>, vector<32x4xf32>
    %29 = tpu.concatenate %24, %0, %28 in 1 : vector<32x4xf32>, vector<32x4xf32>, vector<32x4xf32> -> vector<32x12xf32>
    %c0_9 = arith.constant 0 : index
    %c0_10 = arith.constant 0 : index
    %30 = vector.load %arg2[%c0_9, %c0_10] : memref<12x16xf32, #tpu.memory_space<vmem>>, vector<12x16xf32>
    %cst_11 = arith.constant dense<0.000000e+00> : vector<32x16xf32>
    %31 = tpu.matmul %29, %30, %cst_11 {dimension_numbers = #tpu.dot_dimension_numbers<[1], [0], [0], [1], [0, 0, 1, 1], [], []>} : vector<32x12xf32>, vector<12x16xf32>, vector<32x16xf32> -> vector<32x16xf32>
    %32 = vector.broadcast %1 : vector<1x16xf32> to vector<32x16xf32>
    %33 = arith.addf %31, %32 : vector<32x16xf32>
    %c1 = arith.constant 1 : index
    %c0_12 = arith.constant 0 : index
    %34 = vector.load %arg3[%c1, %c0_12] : memref<3x16xf32, #tpu.memory_space<vmem>>, vector<1x16xf32>
    %c2 = arith.constant 2 : index
    %c0_13 = arith.constant 0 : index
    %35 = vector.load %arg3[%c2, %c0_13] : memref<3x16xf32, #tpu.memory_space<vmem>>, vector<1x16xf32>
    %36 = arith.mulf %33, %33 : vector<32x16xf32>
    %37 = tpu.concatenate %33, %36 in 1 : vector<32x16xf32>, vector<32x16xf32> -> vector<32x32xf32>
    %c0_14 = arith.constant 0 : index
    %c0_15 = arith.constant 0 : index
    %38 = vector.load %arg8[%c0_14, %c0_15] : memref<2x32xf32, #tpu.memory_space<vmem>>, vector<2x32xf32>
    %cst_16 = arith.constant dense<0.000000e+00> : vector<2x32xf32>
    %39 = tpu.matmul %38, %37, %cst_16 {dimension_numbers = #tpu.dot_dimension_numbers<[1], [0], [0], [1], [0, 0, 1, 1], [], []>} : vector<2x32xf32>, vector<32x32xf32>, vector<2x32xf32> -> vector<2x32xf32>
    %c0_17 = arith.constant 0 : index
    %c0_18 = arith.constant 0 : index
    %40 = vector.load %arg4[%c0_17, %c0_18] : memref<32x32xf32, #tpu.memory_space<vmem>>, vector<32x32xf32>
    %cst_19 = arith.constant dense<0.000000e+00> : vector<2x32xf32>
    %41 = tpu.matmul %39, %40, %cst_19 {dimension_numbers = #tpu.dot_dimension_numbers<[1], [0], [0], [1], [0, 0, 1, 1], [], []>} : vector<2x32xf32>, vector<32x32xf32>, vector<2x32xf32> -> vector<2x32xf32>
    %42 = vector.extract_strided_slice %41 {offsets = [0, 0], sizes = [2, 16], strides = [1, 1]} : vector<2x32xf32> to vector<2x16xf32>
    %43 = vector.extract_strided_slice %41 {offsets = [0, 16], sizes = [2, 16], strides = [1, 1]} : vector<2x32xf32> to vector<2x16xf32>
    %44 = arith.mulf %42, %42 : vector<2x16xf32>
    %45 = arith.subf %43, %44 : vector<2x16xf32>
    %cst_20 = arith.constant 9.99999974E-6 : f32
    %46 = vector.broadcast %cst_20 : f32 to vector<2x16xf32>
    %47 = arith.addf %45, %46 : vector<2x16xf32>
    %48 = math.rsqrt %47 : vector<2x16xf32>
    %49 = vector.broadcast %34 : vector<1x16xf32> to vector<2x16xf32>
    %50 = arith.mulf %48, %49 : vector<2x16xf32>
    %51 = arith.mulf %42, %50 : vector<2x16xf32>
    %52 = vector.broadcast %35 : vector<1x16xf32> to vector<2x16xf32>
    %53 = arith.subf %52, %51 : vector<2x16xf32>
    %54 = tpu.concatenate %50, %53 in 1 : vector<2x16xf32>, vector<2x16xf32> -> vector<2x32xf32>
    %c0_21 = arith.constant 0 : index
    %c0_22 = arith.constant 0 : index
    %55 = vector.load %arg9[%c0_21, %c0_22] : memref<32x2xf32, #tpu.memory_space<vmem>>, vector<32x2xf32>
    %cst_23 = arith.constant dense<0.000000e+00> : vector<32x32xf32>
    %56 = tpu.matmul %55, %54, %cst_23 {dimension_numbers = #tpu.dot_dimension_numbers<[1], [0], [0], [1], [0, 0, 1, 1], [], []>} : vector<32x2xf32>, vector<2x32xf32>, vector<32x32xf32> -> vector<32x32xf32>
    %57 = vector.extract_strided_slice %56 {offsets = [0, 0], sizes = [32, 16], strides = [1, 1]} : vector<32x32xf32> to vector<32x16xf32>
    %58 = arith.mulf %33, %57 : vector<32x16xf32>
    %59 = vector.extract_strided_slice %56 {offsets = [0, 16], sizes = [32, 16], strides = [1, 1]} : vector<32x32xf32> to vector<32x16xf32>
    %60 = arith.addf %58, %59 : vector<32x16xf32>
    %cst_24 = arith.constant 0.000000e+00 : f32
    %61 = vector.broadcast %cst_24 : f32 to vector<32x16xf32>
    %62 = arith.cmpf ogt, %60, %61 : vector<32x16xf32>
    %63 = math.exp %60 : vector<32x16xf32>
    %cst_25 = arith.constant 1.000000e+00 : f32
    %64 = vector.broadcast %cst_25 : f32 to vector<32x16xf32>
    %65 = arith.subf %63, %64 : vector<32x16xf32>
    %66 = arith.select %62, %60, %65 : vector<32x16xi1>, vector<32x16xf32>
    %c0_26 = arith.constant 0 : index
    %c0_27 = arith.constant 0 : index
    %67 = vector.load %arg6[%c0_26, %c0_27] : memref<3x32xf32, #tpu.memory_space<vmem>>, vector<1x32xf32>
    %c1_i32_28 = arith.constant 1 : i32
    %68 = tpu.dynamic_rotate %66 by %c1_i32_28 dim 0 : vector<32x16xf32>, i32 -> vector<32x16xf32>
    %c31_i32_29 = arith.constant 31 : i32
    %69 = tpu.dynamic_rotate %66 by %c31_i32_29 dim 0 : vector<32x16xf32>, i32 -> vector<32x16xf32>
    %70 = tpu.iota {dimensions = array<i32: 0>} : vector<32x16xi32>
    %c16_i32_30 = arith.constant 16 : i32
    %c0_i32_31 = arith.constant 0 : i32
    %71 = arith.cmpi eq, %c16_i32_30, %c0_i32_31 : i32
    %c1_i32_32 = arith.constant 1 : i32
    %72 = arith.select %71, %c1_i32_32, %c16_i32_30 : i32
    %73 = vector.broadcast %72 : i32 to vector<32x16xi32>
    %74 = arith.remsi %70, %73 : vector<32x16xi32>
    %c0_i32_33 = arith.constant 0 : i32
    %75 = vector.broadcast %c0_i32_33 : i32 to vector<32x16xi32>
    %76 = arith.cmpi ne, %74, %75 : vector<32x16xi32>
    %c0_i32_34 = arith.constant 0 : i32
    %77 = vector.broadcast %c0_i32_34 : i32 to vector<32x16xi32>
    %78 = arith.cmpi slt, %74, %77 : vector<32x16xi32>
    %c0_i32_35 = arith.constant 0 : i32
    %79 = arith.cmpi slt, %72, %c0_i32_35 : i32
    %80 = vector.broadcast %79 : i1 to vector<32x16xi1>
    %81 = vector.broadcast %80 : vector<32x16xi1> to vector<32x16xi1>
    %82 = arith.xori %78, %81 : vector<32x16xi1>
    %83 = arith.andi %82, %76 : vector<32x16xi1>
    %84 = vector.broadcast %72 : i32 to vector<32x16xi32>
    %85 = arith.addi %74, %84 : vector<32x16xi32>
    %86 = arith.select %83, %85, %74 : vector<32x16xi1>, vector<32x16xi32>
    %c0_i32_36 = arith.constant 0 : i32
    %87 = vector.broadcast %c0_i32_36 : i32 to vector<32x16xi32>
    %88 = arith.cmpi eq, %86, %87 : vector<32x16xi32>
    %cst_37 = arith.constant 0.000000e+00 : f32
    %89 = vector.broadcast %cst_37 : f32 to vector<32x16xf32>
    %90 = arith.select %88, %89, %68 : vector<32x16xi1>, vector<32x16xf32>
    %c15_i32_38 = arith.constant 15 : i32
    %91 = vector.broadcast %c15_i32_38 : i32 to vector<32x16xi32>
    %92 = arith.cmpi eq, %86, %91 : vector<32x16xi32>
    %cst_39 = arith.constant 0.000000e+00 : f32
    %93 = vector.broadcast %cst_39 : f32 to vector<32x16xf32>
    %94 = arith.select %92, %93, %69 : vector<32x16xi1>, vector<32x16xf32>
    %95 = tpu.concatenate %90, %66, %94 in 1 : vector<32x16xf32>, vector<32x16xf32>, vector<32x16xf32> -> vector<32x48xf32>
    %c0_40 = arith.constant 0 : index
    %c0_41 = arith.constant 0 : index
    %96 = vector.load %arg5[%c0_40, %c0_41] : memref<48x32xf32, #tpu.memory_space<vmem>>, vector<48x32xf32>
    %cst_42 = arith.constant dense<0.000000e+00> : vector<32x32xf32>
    %97 = tpu.matmul %95, %96, %cst_42 {dimension_numbers = #tpu.dot_dimension_numbers<[1], [0], [0], [1], [0, 0, 1, 1], [], []>} : vector<32x48xf32>, vector<48x32xf32>, vector<32x32xf32> -> vector<32x32xf32>
    %98 = vector.broadcast %67 : vector<1x32xf32> to vector<32x32xf32>
    %99 = arith.addf %97, %98 : vector<32x32xf32>
    %c1_43 = arith.constant 1 : index
    %c0_44 = arith.constant 0 : index
    %100 = vector.load %arg6[%c1_43, %c0_44] : memref<3x32xf32, #tpu.memory_space<vmem>>, vector<1x32xf32>
    %c2_45 = arith.constant 2 : index
    %c0_46 = arith.constant 0 : index
    %101 = vector.load %arg6[%c2_45, %c0_46] : memref<3x32xf32, #tpu.memory_space<vmem>>, vector<1x32xf32>
    %102 = arith.mulf %99, %99 : vector<32x32xf32>
    %103 = tpu.concatenate %99, %102 in 1 : vector<32x32xf32>, vector<32x32xf32> -> vector<32x64xf32>
    %c0_47 = arith.constant 0 : index
    %c0_48 = arith.constant 0 : index
    %104 = vector.load %arg8[%c0_47, %c0_48] : memref<2x32xf32, #tpu.memory_space<vmem>>, vector<2x32xf32>
    %cst_49 = arith.constant dense<0.000000e+00> : vector<2x64xf32>
    %105 = tpu.matmul %104, %103, %cst_49 {dimension_numbers = #tpu.dot_dimension_numbers<[1], [0], [0], [1], [0, 0, 1, 1], [], []>} : vector<2x32xf32>, vector<32x64xf32>, vector<2x64xf32> -> vector<2x64xf32>
    %c0_50 = arith.constant 0 : index
    %c0_51 = arith.constant 0 : index
    %106 = vector.load %arg7[%c0_50, %c0_51] : memref<64x64xf32, #tpu.memory_space<vmem>>, vector<64x64xf32>
    %cst_52 = arith.constant dense<0.000000e+00> : vector<2x64xf32>
    %107 = tpu.matmul %105, %106, %cst_52 {dimension_numbers = #tpu.dot_dimension_numbers<[1], [0], [0], [1], [0, 0, 1, 1], [], []>} : vector<2x64xf32>, vector<64x64xf32>, vector<2x64xf32> -> vector<2x64xf32>
    %108 = vector.extract_strided_slice %107 {offsets = [0, 0], sizes = [2, 32], strides = [1, 1]} : vector<2x64xf32> to vector<2x32xf32>
    %109 = vector.extract_strided_slice %107 {offsets = [0, 32], sizes = [2, 32], strides = [1, 1]} : vector<2x64xf32> to vector<2x32xf32>
    %110 = arith.mulf %108, %108 : vector<2x32xf32>
    %111 = arith.subf %109, %110 : vector<2x32xf32>
    %cst_53 = arith.constant 9.99999974E-6 : f32
    %112 = vector.broadcast %cst_53 : f32 to vector<2x32xf32>
    %113 = arith.addf %111, %112 : vector<2x32xf32>
    %114 = math.rsqrt %113 : vector<2x32xf32>
    %115 = vector.broadcast %100 : vector<1x32xf32> to vector<2x32xf32>
    %116 = arith.mulf %114, %115 : vector<2x32xf32>
    %117 = arith.mulf %108, %116 : vector<2x32xf32>
    %118 = vector.broadcast %101 : vector<1x32xf32> to vector<2x32xf32>
    %119 = arith.subf %118, %117 : vector<2x32xf32>
    %120 = tpu.concatenate %116, %119 in 1 : vector<2x32xf32>, vector<2x32xf32> -> vector<2x64xf32>
    %c0_54 = arith.constant 0 : index
    %c0_55 = arith.constant 0 : index
    %121 = vector.load %arg9[%c0_54, %c0_55] : memref<32x2xf32, #tpu.memory_space<vmem>>, vector<32x2xf32>
    %cst_56 = arith.constant dense<0.000000e+00> : vector<32x64xf32>
    %122 = tpu.matmul %121, %120, %cst_56 {dimension_numbers = #tpu.dot_dimension_numbers<[1], [0], [0], [1], [0, 0, 1, 1], [], []>} : vector<32x2xf32>, vector<2x64xf32>, vector<32x64xf32> -> vector<32x64xf32>
    %123 = vector.extract_strided_slice %122 {offsets = [0, 0], sizes = [32, 32], strides = [1, 1]} : vector<32x64xf32> to vector<32x32xf32>
    %124 = arith.mulf %99, %123 : vector<32x32xf32>
    %125 = vector.extract_strided_slice %122 {offsets = [0, 32], sizes = [32, 32], strides = [1, 1]} : vector<32x64xf32> to vector<32x32xf32>
    %126 = arith.addf %124, %125 : vector<32x32xf32>
    %cst_57 = arith.constant 0.000000e+00 : f32
    %127 = vector.broadcast %cst_57 : f32 to vector<32x32xf32>
    %128 = arith.cmpf ogt, %126, %127 : vector<32x32xf32>
    %129 = math.exp %126 : vector<32x32xf32>
    %cst_58 = arith.constant 1.000000e+00 : f32
    %130 = vector.broadcast %cst_58 : f32 to vector<32x32xf32>
    %131 = arith.subf %129, %130 : vector<32x32xf32>
    %132 = arith.select %128, %126, %131 : vector<32x32xi1>, vector<32x32xf32>
    %133 = vector.shape_cast %132 : vector<32x32xf32> to vector<2x16x32xf32>
    %c0_59 = arith.constant 0 : index
    %c0_60 = arith.constant 0 : index
    %134 = vector.load %arg10[%c0_59, %c0_60] : memref<8x16xf32, #tpu.memory_space<vmem>>, vector<8x16xf32>
    %135 = vector.shape_cast %134 : vector<8x16xf32> to vector<1x8x16xf32>
    %136 = vector.broadcast %135 : vector<1x8x16xf32> to vector<2x8x16xf32>
    "tpu.trace_start"() <{level = 10 : i32, message = "bol,blc->boc"}> : () -> ()
    %cst_61 = arith.constant dense<0.000000e+00> : vector<2x8x32xf32>
    %137 = tpu.matmul %136, %133, %cst_61 {dimension_numbers = #tpu.dot_dimension_numbers<[2], [1], [1], [2], [0, 0, 0, 1, 1, 2], [0], [0]>} : vector<2x8x16xf32>, vector<2x16x32xf32>, vector<2x8x32xf32> -> vector<2x8x32xf32>
    "tpu.trace_stop"() : () -> ()
    %c0_62 = arith.constant 0 : index
    %c0_63 = arith.constant 0 : index
    %c0_64 = arith.constant 0 : index
    %138 = vector.load %arg11[%c0_62, %c0_63, %c0_64] : memref<2x8x32xf32, #tpu.memory_space<vmem>>, vector<2x8x32xf32>
    tpu.vector_store %arg11[%c0_62, %c0_63, %c0_64], %137 {strides = array<i32>} : memref<2x8x32xf32, #tpu.memory_space<vmem>>, vector<2x8x32xf32>,
    return
  }
  func.func @transform_0(%arg0: i32) -> (i32, i32) {
    %c0_i32 = arith.constant 0 : i32
    %c0_i32_0 = arith.constant 0 : i32
    return %arg0, %c0_i32 : i32, i32
  }
  func.func @transform_1(%arg0: i32) -> (i32, i32) {
    %c0_i32 = arith.constant 0 : i32
    %c0_i32_0 = arith.constant 0 : i32
    %c0_i32_1 = arith.constant 0 : i32
    return %c0_i32, %c0_i32_0 : i32, i32
  }
  func.func @transform_2(%arg0: i32) -> (i32, i32) {
    %c0_i32 = arith.constant 0 : i32
    %c0_i32_0 = arith.constant 0 : i32
    %c0_i32_1 = arith.constant 0 : i32
    return %c0_i32, %c0_i32_0 : i32, i32
  }
  func.func @transform_3(%arg0: i32) -> (i32, i32) {
    %c0_i32 = arith.constant 0 : i32
    %c0_i32_0 = arith.constant 0 : i32
    %c0_i32_1 = arith.constant 0 : i32
    return %c0_i32, %c0_i32_0 : i32, i32
  }
  func.func @transform_4(%arg0: i32) -> (i32, i32) {
    %c0_i32 = arith.constant 0 : i32
    %c0_i32_0 = arith.constant 0 : i32
    %c0_i32_1 = arith.constant 0 : i32
    return %c0_i32, %c0_i32_0 : i32, i32
  }
  func.func @transform_5(%arg0: i32) -> (i32, i32) {
    %c0_i32 = arith.constant 0 : i32
    %c0_i32_0 = arith.constant 0 : i32
    %c0_i32_1 = arith.constant 0 : i32
    return %c0_i32, %c0_i32_0 : i32, i32
  }
  func.func @transform_6(%arg0: i32) -> (i32, i32) {
    %c0_i32 = arith.constant 0 : i32
    %c0_i32_0 = arith.constant 0 : i32
    %c0_i32_1 = arith.constant 0 : i32
    return %c0_i32, %c0_i32_0 : i32, i32
  }
  func.func @transform_7(%arg0: i32) -> (i32, i32) {
    %c0_i32 = arith.constant 0 : i32
    %c0_i32_0 = arith.constant 0 : i32
    %c0_i32_1 = arith.constant 0 : i32
    return %c0_i32, %c0_i32_0 : i32, i32
  }
  func.func @transform_8(%arg0: i32) -> (i32, i32) {
    %c0_i32 = arith.constant 0 : i32
    %c0_i32_0 = arith.constant 0 : i32
    %c0_i32_1 = arith.constant 0 : i32
    return %c0_i32, %c0_i32_0 : i32, i32
  }
  func.func @transform_9(%arg0: i32) -> (i32, i32) {
    %c0_i32 = arith.constant 0 : i32
    %c0_i32_0 = arith.constant 0 : i32
    %c0_i32_1 = arith.constant 0 : i32
    return %c0_i32, %c0_i32_0 : i32, i32
  }
  func.func @transform_10(%arg0: i32) -> (i32, i32, i32) {
    %c0_i32 = arith.constant 0 : i32
    %c0_i32_0 = arith.constant 0 : i32
    %c0_i32_1 = arith.constant 0 : i32
    return %arg0, %c0_i32, %c0_i32_0 : i32, i32, i32
  }
}

</mosaic_0001>

<llo_original>
// kernel: tpu_custom_call.1
$region0: #{tpu_custom_call.1}
  #allocation0 [shape = 'u32[]', space=smem, size = 0x4, offset = 0x4, fixed_abs, tag = 'smem constant byte address 0x4 - core index']
  #allocation1 [shape = 'u32[144,128]{1,0:T(1,128)}', space=vmem, size = 0x12000, scoped, tag = 'internal scratch']
  %s0 = inlined_call_operand.vmem [shape: f32[32,4], index: 0, kind: input, shape index: {}]
  %s1 = inlined_call_operand.vmem [shape: f32[12,16], index: 1, kind: input, shape index: {}]
  %s2 = inlined_call_operand.vmem [shape: f32[3,16], index: 2, kind: input, shape index: {}]
  %s3 = inlined_call_operand.vmem [shape: f32[32,32], index: 3, kind: input, shape index: {}]
  %s4 = inlined_call_operand.vmem [shape: f32[48,32], index: 4, kind: input, shape index: {}]
  %s5 = inlined_call_operand.vmem [shape: f32[3,32], index: 5, kind: input, shape index: {}]
  %s6 = inlined_call_operand.vmem [shape: f32[64,64], index: 6, kind: input, shape index: {}]
  %s7 = inlined_call_operand.vmem [shape: f32[2,32], index: 7, kind: input, shape index: {}]
  %s8 = inlined_call_operand.vmem [shape: f32[32,2], index: 8, kind: input, shape index: {}]
  %s9 = inlined_call_operand.vmem [shape: f32[8,16], index: 9, kind: input, shape index: {}]
  %s10 = inlined_call_operand.hbm [shape: f32[2,8,32], index: 10, kind: output, shape index: {}]
  %s11 = sld [smem:[#allocation0]]
  $region50: #{tpu_custom_call.1} parent=0
    _
  %s13 = ssub.s32 1, %s11
  %s14 = scalar_select 0, %s13, %s11
  $region1: #{tpu_custom_call.1} parent=0
    #allocation2 [shape = 'u8[8192]{0}', space=vmem, size = 0x2000, scoped, tag = 'output window, operand 0, single buffered']
    #allocation3 [shape = 's32[1]{0}', space=sflag, size = 0x4, scoped, tag = 'scoped memory for tpu_custom_call.1']
    %15 = vsyncpa [#allocation3], 0
    // Predicated region
    $region2: #{tpu_custom_call.1} parent=1 // pred_check
      _
    $region3: #{tpu_custom_call.1} parent=1 // pred_check_branch
      %17 = sbr.rel (0) target = $region5
    $region4: #{tpu_custom_call.1} parent=1 // pred_region
      _
    $region5: #{tpu_custom_call.1} parent=1 // pred_fallthru
      _
    // Predicated region
    $region6: #{tpu_custom_call.1} parent=1 // pred_check
      _
    $region7: #{tpu_custom_call.1} parent=1 // pred_check_branch
      %19 = sbr.rel (0) target = $region9
    $region8: #{tpu_custom_call.1} parent=1 // pred_region
      _
    $region9: #{tpu_custom_call.1} parent=1 // pred_fallthru
      _
    // Predicated region
    $region10: #{tpu_custom_call.1} parent=1 // pred_check
      _
    $region11: #{tpu_custom_call.1} parent=1 // pred_check_branch
      %21 = sbr.rel (0) target = $region13
    $region12: #{tpu_custom_call.1} parent=1 // pred_region
      _
    $region13: #{tpu_custom_call.1} parent=1 // pred_fallthru
      _
    // Predicated region
    $region14: #{tpu_custom_call.1} parent=1 // pred_check
      _
    $region15: #{tpu_custom_call.1} parent=1 // pred_check_branch
      %23 = sbr.rel (0) target = $region17
    $region16: #{tpu_custom_call.1} parent=1 // pred_region
      _
    $region17: #{tpu_custom_call.1} parent=1 // pred_fallthru
      _
    // Predicated region
    $region18: #{tpu_custom_call.1} parent=1 // pred_check
      _
    $region19: #{tpu_custom_call.1} parent=1 // pred_check_branch
      %25 = sbr.rel (0) target = $region21
    $region20: #{tpu_custom_call.1} parent=1 // pred_region
      _
    $region21: #{tpu_custom_call.1} parent=1 // pred_fallthru
      _
    // Predicated region
    $region22: #{tpu_custom_call.1} parent=1 // pred_check
      _
    $region23: #{tpu_custom_call.1} parent=1 // pred_check_branch
      %27 = sbr.rel (0) target = $region25
    $region24: #{tpu_custom_call.1} parent=1 // pred_region
      _
    $region25: #{tpu_custom_call.1} parent=1 // pred_fallthru
      _
    // Predicated region
    $region26: #{tpu_custom_call.1} parent=1 // pred_check
      _
    $region27: #{tpu_custom_call.1} parent=1 // pred_check_branch
      %29 = sbr.rel (0) target = $region29
    $region28: #{tpu_custom_call.1} parent=1 // pred_region
      _
    $region29: #{tpu_custom_call.1} parent=1 // pred_fallthru
      _
    // Predicated region
    $region30: #{tpu_custom_call.1} parent=1 // pred_check
      _
    $region31: #{tpu_custom_call.1} parent=1 // pred_check_branch
      %31 = sbr.rel (0) target = $region33
    $region32: #{tpu_custom_call.1} parent=1 // pred_region
      _
    $region33: #{tpu_custom_call.1} parent=1 // pred_fallthru
      _
    // Predicated region
    $region34: #{tpu_custom_call.1} parent=1 // pred_check
      _
    $region35: #{tpu_custom_call.1} parent=1 // pred_check_branch
      %33 = sbr.rel (0) target = $region37
    $region36: #{tpu_custom_call.1} parent=1 // pred_region
      _
    $region37: #{tpu_custom_call.1} parent=1 // pred_fallthru
      _
    // Predicated region
    $region38: #{tpu_custom_call.1} parent=1 // pred_check
      _
    $region39: #{tpu_custom_call.1} parent=1 // pred_check_branch
      %35 = sbr.rel (0) target = $region41
    $region40: #{tpu_custom_call.1} parent=1 // pred_region
      _
    $region41: #{tpu_custom_call.1} parent=1 // pred_fallthru
      _
    %v36 = vld [vmem:[%s0] sm:$0xff]
    %v37 = vld [vmem:[%s0 + $0x8] sm:$0xff]
    %v38 = vld [vmem:[%s0 + $0x10] sm:$0xff]
    %v39 = vld [vmem:[%s0 + $0x18] sm:$0xff]
    %v40 = vld [vmem:[%s2] sm:$0x1]
    %v41 = vrot.slane %v36, 7
    %v42 = vrot.slane %v37, 7
    %v43 = vrot.slane %v38, 7
    %v44 = vrot.slane %v39, 7
    %v45 = vlaneseq
    %v46 = vshrl.u32 %v45, 7
    %vm47 = vcmp.lt.s32.totalorder %v46, 1
    %v48 = vsel %vm47, %v43, %v44
    %v49 = vsel %vm47, %v42, %v43
    %v50 = vsel %vm47, %v41, %v42
    %v51 = vsel %vm47, %v44, %v41
    %v52 = vrot.slane %v36, 1
    %v53 = vrot.slane %v37, 1
    %v54 = vrot.slane %v38, 1
    %v55 = vrot.slane %v39, 1
    %vm56 = vcmp.lt.s32.totalorder %v46, 7
    %v57 = vsel %vm56, %v54, %v55
    %v58 = vsel %vm56, %v53, %v54
    %v59 = vsel %vm56, %v52, %v53
    %v60 = vsel %vm56, %v55, %v52
    %v61 = vadd.s32 %v46, 8
    %v62 = vadd.s32 %v46, 16
    %v63 = vadd.s32 %v46, 24
    %vm64 = vcmp.lt.s32.totalorder %v46, 0
    %v65 = vsub.s32 0, %v46
    %v66 = vsel %vm64, %v65, %v46
    %v67 = vshrl.u32 %v66, 4
    %v68 = vand.u32 %v66, 15
    %v69 = vsub.s32 0, %v68
    %v70 = vsel %vm64, %v69, %v68
    %vm71 = vcmp.lt.s32.totalorder %v61, 0
    %v72 = vsub.s32 0, %v61
    %v73 = vsel %vm71, %v72, %v61
    %v74 = vshrl.u32 %v73, 4
    %v75 = vand.u32 %v73, 15
    %v76 = vsub.s32 0, %v75
    %v77 = vsel %vm71, %v76, %v75
    %vm78 = vcmp.lt.s32.totalorder %v62, 0
    %v79 = vsub.s32 0, %v62
    %v80 = vsel %vm78, %v79, %v62
    %v81 = vshrl.u32 %v80, 4
    %v82 = vand.u32 %v80, 15
    %v83 = vsub.s32 0, %v82
    %v84 = vsel %vm78, %v83, %v82
    %vm85 = vcmp.lt.s32.totalorder %v63, 0
    %v86 = vsub.s32 0, %v63
    %v87 = vsel %vm85, %v86, %v63
    %v88 = vshrl.u32 %v87, 4
    %v89 = vand.u32 %v87, 15
    %v90 = vsub.s32 0, %v89
    %v91 = vsel %vm85, %v90, %v89
    %vm92 = vcmp.ne.s32.totalorder %v70, 0
    %vm93 = vcmp.ne.s32.totalorder %v77, 0
    %vm94 = vcmp.ne.s32.totalorder %v84, 0
    %vm95 = vcmp.ne.s32.totalorder %v91, 0
    %vm96 = vcmp.lt.s32.totalorder %v70, 0
    %vm97 = vcmp.lt.s32.totalorder %v77, 0
    %vm98 = vcmp.lt.s32.totalorder %v84, 0
    %vm99 = vcmp.lt.s32.totalorder %v91, 0
    %vm100 = vmand %vm96, %vm92
    %vm101 = vmand %vm97, %vm93
    %vm102 = vmand %vm98, %vm94
    %vm103 = vmand %vm99, %vm95
    %v104 = vadd.s32 %v70, 16
    %v105 = vadd.s32 %v77, 16
    %v106 = vadd.s32 %v84, 16
    %v107 = vadd.s32 %v91, 16
    %v108 = vsel %vm100, %v104, %v70
    %v109 = vsel %vm101, %v105, %v77
    %v110 = vsel %vm102, %v106, %v84
    %v111 = vsel %vm103, %v107, %v91
    %vm112 = vcmp.eq.s32.totalorder %v108, 0
    %vm113 = vcmp.eq.s32.totalorder %v109, 0
    %vm114 = vcmp.eq.s32.totalorder %v110, 0
    %vm115 = vcmp.eq.s32.totalorder %v111, 0
    %v116 = vsel %vm112, 0.0, %v51
    %v117 = vsel %vm113, 0.0, %v50
    %v118 = vsel %vm114, 0.0, %v49
    %v119 = vsel %vm115, 0.0, %v48
    %vm120 = vcmp.eq.s32.totalorder %v108, 15
    %vm121 = vcmp.eq.s32.totalorder %v109, 15
    %vm122 = vcmp.eq.s32.totalorder %v110, 15
    %vm123 = vcmp.eq.s32.totalorder %v111, 15
    %v124 = vsel %vm120, 0.0, %v59
    %v125 = vsel %vm121, 0.0, %v58
    %v126 = vsel %vm122, 0.0, %v57
    %v127 = vsel %vm123, 0.0, %v60
    %132 = vrot.lane.b32.xlu0 %v36, 4
    %v133 = vpop.permute.xlu0 %132
    %134 = vrot.lane.b32.xlu0 %v37, 4
    %v135 = vpop.permute.xlu0 %134
    %136 = vrot.lane.b32.xlu0 %v38, 4
    %v137 = vpop.permute.xlu0 %136
    %138 = vrot.lane.b32.xlu0 %v39, 4
    %v139 = vpop.permute.xlu0 %138
    %148 = vrot.lane.b32.xlu0 %v124, 8
    %v149 = vpop.permute.xlu0 %148
    %150 = vrot.lane.b32.xlu0 %v125, 8
    %v151 = vpop.permute.xlu0 %150
    %152 = vrot.lane.b32.xlu0 %v126, 8
    %v153 = vpop.permute.xlu0 %152
    %154 = vrot.lane.b32.xlu0 %v127, 8
    %v155 = vpop.permute.xlu0 %154
    %vm160 = vcmask 31744
    %v161 = vsel %vm160, %v116, %v133
    %v162 = vsel %vm160, %v117, %v135
    %v163 = vsel %vm160, %v118, %v137
    %v164 = vsel %vm160, %v119, %v139
    %vm165 = vcmask 64512
    %v166 = vsel %vm165, %v161, %v149
    %v167 = vsel %vm165, %v162, %v151
    %v168 = vsel %vm165, %v163, %v153
    %v169 = vsel %vm165, %v164, %v155
    %v170 = vld [vmem:[%s1] sm:$0xff]
    %v171 = vld [vmem:[%s1 + $0x8] sm:$0xf]
    %v172 = vlaneseq
    %v173 = vshrl.u32 %v172, 7
    %v174 = vsub.s32 0, %v173
    %v175 = vrot.slane %v40, %v174
    %vm176 = vcmask 97280
    %v178 = vsel %vm176, %v166, 0
    %v181 = vsel %vm176, %v167, 0
    %v184 = vsel %vm176, %v168, 0
    %v187 = vsel %vm176, %v169, 0
    %vm189 = vcmask 1043456
    %v191 = vsel %vm189, %v171, 0
    %193 = vmatprep.subr.mxu0 0.0
    %194 = vmatpush1.msra.mxu0 %v170
    %195 = vmatprep.subr.mxu0 0.0
    %196 = vmatpush1.msra.mxu0 %v191
    %197 = vmatprep.subr.mxu0 0.0
    %198 = vmatpush1.msra.mxu0 0.0
    %199 = vmatprep.subr.mxu0 0.0
    %200 = vmatpush1.msra.mxu0 0.0
    %201 = vmatprep.subr.mxu0 0.0
    %202 = vmatpush1.msra.mxu0 0.0
    %203 = vmatprep.subr.mxu0 0.0
    %204 = vmatpush1.msra.mxu0 0.0
    %205 = vmatprep.subr.mxu0 0.0
    %206 = vmatpush1.msra.mxu0 0.0
    %207 = vmatprep.subr.mxu0 0.0
    %208 = vmatpush1.msra.mxu0 0.0
    %209 = vmatprep.subr.mxu0 0.0
    %210 = vmatpush1.msra.mxu0 0.0
    %211 = vmatprep.subr.mxu0 0.0
    %212 = vmatpush1.msra.mxu0 0.0
    %213 = vmatprep.subr.mxu0 0.0
    %214 = vmatpush1.msra.mxu0 0.0
    %215 = vmatprep.subr.mxu0 0.0
    %216 = vmatpush1.msra.mxu0 0.0
    %217 = vmatprep.subr.mxu0 0.0
    %218 = vmatpush1.msra.mxu0 0.0
    %219 = vmatprep.subr.mxu0 0.0
    %220 = vmatpush1.msra.mxu0 0.0
    %221 = vmatprep.subr.mxu0 0.0
    %222 = vmatpush1.msra.mxu0 0.0
    %223 = vmatprep.subr.mxu0 0.0
    %224 = vmatpush1.msra.mxu0 0.0
    %225 = vmatprep.subr.mxu0 0.0
    %226 = vmatpush1.msra.mxu0 0.0
    %227 = vmatprep.subr.mxu0 0.0
    %228 = vmatpush1.msra.mxu0 0.0
    %229 = vmatprep.subr.mxu0 0.0
    %230 = vmatpush1.msra.mxu0 0.0
    %231 = vmatprep.subr.mxu0 0.0
    %232 = vmatpush1.msra.mxu0 0.0
    %233 = vmatprep.subr.mxu0 0.0
    %234 = vmatpush1.msra.mxu0 0.0
    %235 = vmatprep.subr.mxu0 0.0
    %236 = vmatpush1.msra.mxu0 0.0
    %237 = vmatprep.subr.mxu0 0.0
    %238 = vmatpush1.msra.mxu0 0.0
    %239 = vmatprep.subr.mxu0 0.0
    %240 = vmatpush1.msra.mxu0 0.0
    %241 = vmatprep.subr.mxu0 0.0
    %242 = vmatpush1.msra.mxu0 0.0
    %243 = vmatprep.subr.mxu0 0.0
    %244 = vmatpush1.msra.mxu0 0.0
    %245 = vmatprep.subr.mxu0 0.0
    %246 = vmatpush1.msra.mxu0 0.0
    %247 = vmatprep.subr.mxu0 0.0
    %248 = vmatpush1.msra.mxu0 0.0
    %249 = vmatprep.subr.mxu0 0.0
    %250 = vmatpush1.msra.mxu0 0.0
    %251 = vmatprep.subr.mxu0 0.0
    %252 = vmatpush1.msra.mxu0 0.0
    %253 = vmatprep.subr.mxu0 0.0
    %254 = vmatpush1.msra.mxu0 0.0
    %255 = vmatprep.subr.mxu0 0.0
    %256 = vmatpush1.msra.mxu0 0.0
    %257 = vmatprep.mubr.f32.mxu0 0.0
    %258 = vmatmul.mubr.f32.gmra.mrb[0].mxu0 %v178
    %v259 = vpop.f32.mrb[0].mxu0
    %v260 = vadd.f32 %v175, %v259
    %v261 = vpop.f32.mrb[0].mxu0
    %262 = vmatprep.mubr.f32.mxu0 0.0
    %263 = vmatmul.mubr.f32.gmra.mrb[0].mxu0 %v181
    %v264 = vpop.f32.mrb[0].mxu0
    %v265 = vadd.f32 %v175, %v264
    %v266 = vpop.f32.mrb[0].mxu0
    %267 = vmatprep.mubr.f32.mxu0 0.0
    %268 = vmatmul.mubr.f32.gmra.mrb[0].mxu0 %v184
    %v269 = vpop.f32.mrb[0].mxu0
    %v270 = vadd.f32 %v175, %v269
    %v271 = vpop.f32.mrb[0].mxu0
    %272 = vmatprep.mubr.f32.mxu0 0.0
    %273 = vmatmul.mubr.f32.gmra.mrb[0].mxu0 %v187
    %v274 = vpop.f32.mrb[0].mxu0
    %v275 = vadd.f32 %v175, %v274
    %v276 = vpop.f32.mrb[0].mxu0
    %277 = vdwg.mxu0
    %v278 = vld [vmem:[%s2 + $0x1] sm:$0x1]
    %v279 = vld [vmem:[%s2 + $0x2] sm:$0x1]
    %v280 = vmul.f32 %v260, %v260
    %v281 = vmul.f32 %v265, %v265
    %v282 = vmul.f32 %v270, %v270
    %v283 = vmul.f32 %v275, %v275
    %288 = vrot.lane.b32.xlu0 %v280, 16
    %v289 = vpop.permute.xlu0 %288
    %290 = vrot.lane.b32.xlu0 %v281, 16
    %v291 = vpop.permute.xlu0 %290
    %292 = vrot.lane.b32.xlu0 %v282, 16
    %v293 = vpop.permute.xlu0 %292
    %294 = vrot.lane.b32.xlu0 %v283, 16
    %v295 = vpop.permute.xlu0 %294
    %vm300 = vcmask 130048
    %v301 = vsel %vm300, %v260, %v289
    %v302 = vsel %vm300, %v265, %v291
    %v303 = vsel %vm300, %v270, %v293
    %v304 = vsel %vm300, %v275, %v295
    %v305 = vld [vmem:[%s7] sm:$0x3]
    %vm306 = vcmask 261120
    %v308 = vsel %vm306, %v305, 0
    %310 = vmatprep.subr.mxu0 0.0
    %311 = vmatpush1.msra.mxu0 %v301
    %312 = vmatprep.subr.mxu0 0.0
    %313 = vmatpush1.msra.mxu0 %v302
    %314 = vmatprep.subr.mxu0 0.0
    %315 = vmatpush1.msra.mxu0 %v303
    %316 = vmatprep.subr.mxu0 0.0
    %317 = vmatpush1.msra.mxu0 %v304
    %318 = vmatprep.subr.mxu0 0.0
    %319 = vmatpush1.msra.mxu0 0.0
    %320 = vmatprep.subr.mxu0 0.0
    %321 = vmatpush1.msra.mxu0 0.0
    %322 = vmatprep.subr.mxu0 0.0
    %323 = vmatpush1.msra.mxu0 0.0
    %324 = vmatprep.subr.mxu0 0.0
    %325 = vmatpush1.msra.mxu0 0.0
    %326 = vmatprep.subr.mxu0 0.0
    %327 = vmatpush1.msra.mxu0 0.0
    %328 = vmatprep.subr.mxu0 0.0
    %329 = vmatpush1.msra.mxu0 0.0
    %330 = vmatprep.subr.mxu0 0.0
    %331 = vmatpush1.msra.mxu0 0.0
    %332 = vmatprep.subr.mxu0 0.0
    %333 = vmatpush1.msra.mxu0 0.0
    %334 = vmatprep.subr.mxu0 0.0
    %335 = vmatpush1.msra.mxu0 0.0
    %336 = vmatprep.subr.mxu0 0.0
    %337 = vmatpush1.msra.mxu0 0.0
    %338 = vmatprep.subr.mxu0 0.0
    %339 = vmatpush1.msra.mxu0 0.0
    %340 = vmatprep.subr.mxu0 0.0
    %341 = vmatpush1.msra.mxu0 0.0
    %342 = vmatprep.subr.mxu0 0.0
    %343 = vmatpush1.msra.mxu0 0.0
    %344 = vmatprep.subr.mxu0 0.0
    %345 = vmatpush1.msra.mxu0 0.0
    %346 = vmatprep.subr.mxu0 0.0
    %347 = vmatpush1.msra.mxu0 0.0
    %348 = vmatprep.subr.mxu0 0.0
    %349 = vmatpush1.msra.mxu0 0.0
    %350 = vmatprep.subr.mxu0 0.0
    %351 = vmatpush1.msra.mxu0 0.0
    %352 = vmatprep.subr.mxu0 0.0
    %353 = vmatpush1.msra.mxu0 0.0
    %354 = vmatprep.subr.mxu0 0.0
    %355 = vmatpush1.msra.mxu0 0.0
    %356 = vmatprep.subr.mxu0 0.0
    %357 = vmatpush1.msra.mxu0 0.0
    %358 = vmatprep.subr.mxu0 0.0
    %359 = vmatpush1.msra.mxu0 0.0
    %360 = vmatprep.subr.mxu0 0.0
    %361 = vmatpush1.msra.mxu0 0.0
    %362 = vmatprep.subr.mxu0 0.0
    %363 = vmatpush1.msra.mxu0 0.0
    %364 = vmatprep.subr.mxu0 0.0
    %365 = vmatpush1.msra.mxu0 0.0
    %366 = vmatprep.subr.mxu0 0.0
    %367 = vmatpush1.msra.mxu0 0.0
    %368 = vmatprep.subr.mxu0 0.0
    %369 = vmatpush1.msra.mxu0 0.0
    %370 = vmatprep.subr.mxu0 0.0
    %371 = vmatpush1.msra.mxu0 0.0
    %372 = vmatprep.subr.mxu0 0.0
    %373 = vmatpush1.msra.mxu0 0.0
    %374 = vmatprep.mubr.f32.mxu0 0.0
    %375 = vmatmul.mubr.f32.gmra.mrb[0].mxu0 %v308
    %v376 = vpop.f32.mrb[0].mxu0
    %v377 = vadd.f32 0.0, %v376
    %v378 = vpop.f32.mrb[0].mxu0
    %379 = vdwg.mxu0
    %v380 = vld [vmem:[%s3] sm:$0xff]
    %v381 = vld [vmem:[%s3 + $0x8] sm:$0xff]
    %v382 = vld [vmem:[%s3 + $0x10] sm:$0xff]
    %v383 = vld [vmem:[%s3 + $0x18] sm:$0xff]
    %v385 = vsel %vm306, %v377, 0
    %387 = vmatprep.subr.mxu0 0.0
    %388 = vmatpush1.msra.mxu0 %v380
    %389 = vmatprep.subr.mxu0 0.0
    %390 = vmatpush1.msra.mxu0 %v381
    %391 = vmatprep.subr.mxu0 0.0
    %392 = vmatpush1.msra.mxu0 %v382
    %393 = vmatprep.subr.mxu0 0.0
    %394 = vmatpush1.msra.mxu0 %v383
    %395 = vmatprep.subr.mxu0 0.0
    %396 = vmatpush1.msra.mxu0 0.0
    %397 = vmatprep.subr.mxu0 0.0
    %398 = vmatpush1.msra.mxu0 0.0
    %399 = vmatprep.subr.mxu0 0.0
    %400 = vmatpush1.msra.mxu0 0.0
    %401 = vmatprep.subr.mxu0 0.0
    %402 = vmatpush1.msra.mxu0 0.0
    %403 = vmatprep.subr.mxu0 0.0
    %404 = vmatpush1.msra.mxu0 0.0
    %405 = vmatprep.subr.mxu0 0.0
    %406 = vmatpush1.msra.mxu0 0.0
    %407 = vmatprep.subr.mxu0 0.0
    %408 = vmatpush1.msra.mxu0 0.0
    %409 = vmatprep.subr.mxu0 0.0
    %410 = vmatpush1.msra.mxu0 0.0
    %411 = vmatprep.subr.mxu0 0.0
    %412 = vmatpush1.msra.mxu0 0.0
    %413 = vmatprep.subr.mxu0 0.0
    %414 = vmatpush1.msra.mxu0 0.0
    %415 = vmatprep.subr.mxu0 0.0
    %416 = vmatpush1.msra.mxu0 0.0
    %417 = vmatprep.subr.mxu0 0.0
    %418 = vmatpush1.msra.mxu0 0.0
    %419 = vmatprep.subr.mxu0 0.0
    %420 = vmatpush1.msra.mxu0 0.0
    %421 = vmatprep.subr.mxu0 0.0
    %422 = vmatpush1.msra.mxu0 0.0
    %423 = vmatprep.subr.mxu0 0.0
    %424 = vmatpush1.msra.mxu0 0.0
    %425 = vmatprep.subr.mxu0 0.0
    %426 = vmatpush1.msra.mxu0 0.0
    %427 = vmatprep.subr.mxu0 0.0
    %428 = vmatpush1.msra.mxu0 0.0
    %429 = vmatprep.subr.mxu0 0.0
    %430 = vmatpush1.msra.mxu0 0.0
    %431 = vmatprep.subr.mxu0 0.0
    %432 = vmatpush1.msra.mxu0 0.0
    %433 = vmatprep.subr.mxu0 0.0
    %434 = vmatpush1.msra.mxu0 0.0
    %435 = vmatprep.subr.mxu0 0.0
    %436 = vmatpush1.msra.mxu0 0.0
    %437 = vmatprep.subr.mxu0 0.0
    %438 = vmatpush1.msra.mxu0 0.0
    %439 = vmatprep.subr.mxu0 0.0
    %440 = vmatpush1.msra.mxu0 0.0
    %441 = vmatprep.subr.mxu0 0.0
    %442 = vmatpush1.msra.mxu0 0.0
    %443 = vmatprep.subr.mxu0 0.0
    %444 = vmatpush1.msra.mxu0 0.0
    %445 = vmatprep.subr.mxu0 0.0
    %446 = vmatpush1.msra.mxu0 0.0
    %447 = vmatprep.subr.mxu0 0.0
    %448 = vmatpush1.msra.mxu0 0.0
    %449 = vmatprep.subr.mxu0 0.0
    %450 = vmatpush1.msra.mxu0 0.0
    %451 = vmatprep.mubr.f32.mxu0 0.0
    %452 = vmatmul.mubr.f32.gmra.mrb[0].mxu0 %v385
    %v453 = vpop.f32.mrb[0].mxu0
    %v454 = vadd.f32 0.0, %v453
    %v455 = vpop.f32.mrb[0].mxu0
    %456 = vdwg.mxu0
    %v457 = vmul.f32 %v454, %v454
    %459 = vrot.lane.b32.xlu0 %v457, 16
    %v460 = vpop.permute.xlu0 %459
    %v462 = vsub.f32 %v454, %v460
    %v463 = vadd.f32 %v462, 1e-05
    %v464 = vrsqrt.pop %v463
    %v465 = vlaneseq
    %v466 = vshrl.u32 %v465, 7
    %v467 = vsub.s32 0, %v466
    %v468 = vrot.slane %v278, %v467
    %470 = vrot.lane.b32.xlu0 %v468, 16
    %v471 = vpop.permute.xlu0 %470
    %v473 = vmul.f32 %v464, %v471
    %475 = vrot.lane.b32.xlu0 %v473, 112
    %v476 = vpop.permute.xlu0 %475
    %v478 = vmul.f32 %v454, %v476
    %v479 = vlaneseq
    %v480 = vshrl.u32 %v479, 7
    %v481 = vsub.s32 0, %v480
    %v482 = vrot.slane %v279, %v481
    %v483 = vsub.f32 %v482, %v478
    %485 = vrot.lane.b32.xlu0 %v483, 16
    %v486 = vpop.permute.xlu0 %485
    %v488 = vsel %vm300, %v476, %v486
    %v489 = vld [vmem:[%s8] sm:$0xff]
    %v490 = vld [vmem:[%s8 + $0x8] sm:$0xff]
    %v491 = vld [vmem:[%s8 + $0x10] sm:$0xff]
    %v492 = vld [vmem:[%s8 + $0x18] sm:$0xff]
    %vm493 = vcmask 15360
    %v495 = vsel %vm493, %v489, 0
    %v498 = vsel %vm493, %v490, 0
    %v501 = vsel %vm493, %v491, 0
    %v504 = vsel %vm493, %v492, 0
    %vm506 = vcmask 1041408
    %v508 = vsel %vm506, %v488, 0
    %510 = vmatprep.subr.mxu0 0.0
    %511 = vmatpush1.msra.mxu0 %v508
    %512 = vmatprep.subr.mxu0 0.0
    %513 = vmatpush1.msra.mxu0 0.0
    %514 = vmatprep.subr.mxu0 0.0
    %515 = vmatpush1.msra.mxu0 0.0
    %516 = vmatprep.subr.mxu0 0.0
    %517 = vmatpush1.msra.mxu0 0.0
    %518 = vmatprep.subr.mxu0 0.0
    %519 = vmatpush1.msra.mxu0 0.0
    %520 = vmatprep.subr.mxu0 0.0
    %521 = vmatpush1.msra.mxu0 0.0
    %522 = vmatprep.subr.mxu0 0.0
    %523 = vmatpush1.msra.mxu0 0.0
    %524 = vmatprep.subr.mxu0 0.0
    %525 = vmatpush1.msra.mxu0 0.0
    %526 = vmatprep.subr.mxu0 0.0
    %527 = vmatpush1.msra.mxu0 0.0
    %528 = vmatprep.subr.mxu0 0.0
    %529 = vmatpush1.msra.mxu0 0.0
    %530 = vmatprep.subr.mxu0 0.0
    %531 = vmatpush1.msra.mxu0 0.0
    %532 = vmatprep.subr.mxu0 0.0
    %533 = vmatpush1.msra.mxu0 0.0
    %534 = vmatprep.subr.mxu0 0.0
    %535 = vmatpush1.msra.mxu0 0.0
    %536 = vmatprep.subr.mxu0 0.0
    %537 = vmatpush1.msra.mxu0 0.0
    %538 = vmatprep.subr.mxu0 0.0
    %539 = vmatpush1.msra.mxu0 0.0
    %540 = vmatprep.subr.mxu0 0.0
    %541 = vmatpush1.msra.mxu0 0.0
    %542 = vmatprep.subr.mxu0 0.0
    %543 = vmatpush1.msra.mxu0 0.0
    %544 = vmatprep.subr.mxu0 0.0
    %545 = vmatpush1.msra.mxu0 0.0
    %546 = vmatprep.subr.mxu0 0.0
    %547 = vmatpush1.msra.mxu0 0.0
    %548 = vmatprep.subr.mxu0 0.0
    %549 = vmatpush1.msra.mxu0 0.0
    %550 = vmatprep.subr.mxu0 0.0
    %551 = vmatpush1.msra.mxu0 0.0
    %552 = vmatprep.subr.mxu0 0.0
    %553 = vmatpush1.msra.mxu0 0.0
    %554 = vmatprep.subr.mxu0 0.0
    %555 = vmatpush1.msra.mxu0 0.0
    %556 = vmatprep.subr.mxu0 0.0
    %557 = vmatpush1.msra.mxu0 0.0
    %558 = vmatprep.subr.mxu0 0.0
    %559 = vmatpush1.msra.mxu0 0.0
    %560 = vmatprep.subr.mxu0 0.0
    %561 = vmatpush1.msra.mxu0 0.0
    %562 = vmatprep.subr.mxu0 0.0
    %563 = vmatpush1.msra.mxu0 0.0
    %564 = vmatprep.subr.mxu0 0.0
    %565 = vmatpush1.msra.mxu0 0.0
    %566 = vmatprep.subr.mxu0 0.0
    %567 = vmatpush1.msra.mxu0 0.0
    %568 = vmatprep.subr.mxu0 0.0
    %569 = vmatpush1.msra.mxu0 0.0
    %570 = vmatprep.subr.mxu0 0.0
    %571 = vmatpush1.msra.mxu0 0.0
    %572 = vmatprep.subr.mxu0 0.0
    %573 = vmatpush1.msra.mxu0 0.0
    %574 = vmatprep.mubr.f32.mxu0 0.0
    %575 = vmatmul.mubr.f32.gmra.mrb[0].mxu0 %v495
    %v576 = vpop.f32.mrb[0].mxu0
    %v577 = vadd.f32 0.0, %v576
    %v578 = vpop.f32.mrb[0].mxu0
    %579 = vmatprep.mubr.f32.mxu0 0.0
    %580 = vmatmul.mubr.f32.gmra.mrb[0].mxu0 %v498
    %v581 = vpop.f32.mrb[0].mxu0
    %v582 = vadd.f32 0.0, %v581
    %v583 = vpop.f32.mrb[0].mxu0
    %584 = vmatprep.mubr.f32.mxu0 0.0
    %585 = vmatmul.mubr.f32.gmra.mrb[0].mxu0 %v501
    %v586 = vpop.f32.mrb[0].mxu0
    %v587 = vadd.f32 0.0, %v586
    %v588 = vpop.f32.mrb[0].mxu0
    %589 = vmatprep.mubr.f32.mxu0 0.0
    %590 = vmatmul.mubr.f32.gmra.mrb[0].mxu0 %v504
    %v591 = vpop.f32.mrb[0].mxu0
    %v592 = vadd.f32 0.0, %v591
    %v593 = vpop.f32.mrb[0].mxu0
    %594 = vdwg.mxu0
    %v595 = vmul.f32 %v260, %v577
    %v596 = vmul.f32 %v265, %v582
    %v597 = vmul.f32 %v270, %v587
    %v598 = vmul.f32 %v275, %v592
    %603 = vrot.lane.b32.xlu0 %v577, 112
    %v604 = vpop.permute.xlu0 %603
    %605 = vrot.lane.b32.xlu0 %v582, 112
    %v606 = vpop.permute.xlu0 %605
    %607 = vrot.lane.b32.xlu0 %v587, 112
    %v608 = vpop.permute.xlu0 %607
    %609 = vrot.lane.b32.xlu0 %v592, 112
    %v610 = vpop.permute.xlu0 %609
    %v615 = vadd.f32 %v595, %v604
    %v616 = vadd.f32 %v596, %v606
    %v617 = vadd.f32 %v597, %v608
    %v618 = vadd.f32 %v598, %v610
    %vm619 = vcmp.gt.f32.partialorder %v615, 0.0
    %vm620 = vcmp.gt.f32.partialorder %v616, 0.0
    %vm621 = vcmp.gt.f32.partialorder %v617, 0.0
    %vm622 = vcmp.gt.f32.partialorder %v618, 0.0
    %v623 = vmul.f32 %v615, 1.442695
    %v624 = vpow.pop %v623
    %v625 = vmul.f32 %v616, 1.442695
    %v626 = vpow.pop %v625
    %v627 = vmul.f32 %v617, 1.442695
    %v628 = vpow.pop %v627
    %v629 = vmul.f32 %v618, 1.442695
    %v630 = vpow.pop %v629
    %v631 = vsub.f32 %v624, 1.0
    %v632 = vsub.f32 %v626, 1.0
    %v633 = vsub.f32 %v628, 1.0
    %v634 = vsub.f32 %v630, 1.0
    %v635 = vsel %vm619, %v615, %v631
    %v636 = vsel %vm620, %v616, %v632
    %v637 = vsel %vm621, %v617, %v633
    %v638 = vsel %vm622, %v618, %v634
    %v639 = vld [vmem:[%s5] sm:$0x1]
    %v640 = vrot.slane %v635, 7
    %v641 = vrot.slane %v636, 7
    %v642 = vrot.slane %v637, 7
    %v643 = vrot.slane %v638, 7
    %v644 = vsel %vm47, %v642, %v643
    %v645 = vsel %vm47, %v641, %v642
    %v646 = vsel %vm47, %v640, %v641
    %v647 = vsel %vm47, %v643, %v640
    %v648 = vrot.slane %v635, 1
    %v649 = vrot.slane %v636, 1
    %v650 = vrot.slane %v637, 1
    %v651 = vrot.slane %v638, 1
    %v652 = vsel %vm56, %v650, %v651
    %v653 = vsel %vm56, %v649, %v650
    %v654 = vsel %vm56, %v648, %v649
    %v655 = vsel %vm56, %v651, %v648
    %v656 = vsel %vm112, 0.0, %v647
    %v657 = vsel %vm113, 0.0, %v646
    %v658 = vsel %vm114, 0.0, %v645
    %v659 = vsel %vm115, 0.0, %v644
    %v660 = vsel %vm120, 0.0, %v654
    %v661 = vsel %vm121, 0.0, %v653
    %v662 = vsel %vm122, 0.0, %v652
    %v663 = vsel %vm123, 0.0, %v655
    %668 = vrot.lane.b32.xlu0 %v635, 16
    %v669 = vpop.permute.xlu0 %668
    %670 = vrot.lane.b32.xlu0 %v636, 16
    %v671 = vpop.permute.xlu0 %670
    %672 = vrot.lane.b32.xlu0 %v637, 16
    %v673 = vpop.permute.xlu0 %672
    %674 = vrot.lane.b32.xlu0 %v638, 16
    %v675 = vpop.permute.xlu0 %674
    %684 = vrot.lane.b32.xlu0 %v660, 32
    %v685 = vpop.permute.xlu0 %684
    %686 = vrot.lane.b32.xlu0 %v661, 32
    %v687 = vpop.permute.xlu0 %686
    %688 = vrot.lane.b32.xlu0 %v662, 32
    %v689 = vpop.permute.xlu0 %688
    %690 = vrot.lane.b32.xlu0 %v663, 32
    %v691 = vpop.permute.xlu0 %690
    %v696 = vsel %vm300, %v656, %v669
    %v697 = vsel %vm300, %v657, %v671
    %v698 = vsel %vm300, %v658, %v673
    %v699 = vsel %vm300, %v659, %v675
    %v700 = vsel %vm306, %v696, %v685
    %v701 = vsel %vm306, %v697, %v687
    %v702 = vsel %vm306, %v698, %v689
    %v703 = vsel %vm306, %v699, %v691
    %v704 = vld [vmem:[%s4] sm:$0xff]
    %v705 = vld [vmem:[%s4 + $0x8] sm:$0xff]
    %v706 = vld [vmem:[%s4 + $0x10] sm:$0xff]
    %v707 = vld [vmem:[%s4 + $0x18] sm:$0xff]
    %v708 = vld [vmem:[%s4 + $0x20] sm:$0xff]
    %v709 = vld [vmem:[%s4 + $0x28] sm:$0xff]
    %v710 = vlaneseq
    %v711 = vshrl.u32 %v710, 7
    %v712 = vsub.s32 0, %v711
    %v713 = vrot.slane %v639, %v712
    %vm714 = vcmask 392192
    %v716 = vsel %vm714, %v700, 0
    %v719 = vsel %vm714, %v701, 0
    %v722 = vsel %vm714, %v702, 0
    %v725 = vsel %vm714, %v703, 0
    %727 = vmatprep.subr.mxu0 0.0
    %728 = vmatpush1.msra.mxu0 %v704
    %729 = vmatprep.subr.mxu0 0.0
    %730 = vmatpush1.msra.mxu0 %v705
    %731 = vmatprep.subr.mxu0 0.0
    %732 = vmatpush1.msra.mxu0 %v706
    %733 = vmatprep.subr.mxu0 0.0
    %734 = vmatpush1.msra.mxu0 %v707
    %735 = vmatprep.subr.mxu0 0.0
    %736 = vmatpush1.msra.mxu0 %v708
    %737 = vmatprep.subr.mxu0 0.0
    %738 = vmatpush1.msra.mxu0 %v709
    %739 = vmatprep.subr.mxu0 0.0
    %740 = vmatpush1.msra.mxu0 0.0
    %741 = vmatprep.subr.mxu0 0.0
    %742 = vmatpush1.msra.mxu0 0.0
    %743 = vmatprep.subr.mxu0 0.0
    %744 = vmatpush1.msra.mxu0 0.0
    %745 = vmatprep.subr.mxu0 0.0
    %746 = vmatpush1.msra.mxu0 0.0
    %747 = vmatprep.subr.mxu0 0.0
    %748 = vmatpush1.msra.mxu0 0.0
    %749 = vmatprep.subr.mxu0 0.0
    %750 = vmatpush1.msra.mxu0 0.0
    %751 = vmatprep.subr.mxu0 0.0
    %752 = vmatpush1.msra.mxu0 0.0
    %753 = vmatprep.subr.mxu0 0.0
    %754 = vmatpush1.msra.mxu0 0.0
    %755 = vmatprep.subr.mxu0 0.0
    %756 = vmatpush1.msra.mxu0 0.0
    %757 = vmatprep.subr.mxu0 0.0
    %758 = vmatpush1.msra.mxu0 0.0
    %759 = vmatprep.subr.mxu0 0.0
    %760 = vmatpush1.msra.mxu0 0.0
    %761 = vmatprep.subr.mxu0 0.0
    %762 = vmatpush1.msra.mxu0 0.0
    %763 = vmatprep.subr.mxu0 0.0
    %764 = vmatpush1.msra.mxu0 0.0
    %765 = vmatprep.subr.mxu0 0.0
    %766 = vmatpush1.msra.mxu0 0.0
    %767 = vmatprep.subr.mxu0 0.0
    %768 = vmatpush1.msra.mxu0 0.0
    %769 = vmatprep.subr.mxu0 0.0
    %770 = vmatpush1.msra.mxu0 0.0
    %771 = vmatprep.subr.mxu0 0.0
    %772 = vmatpush1.msra.mxu0 0.0
    %773 = vmatprep.subr.mxu0 0.0
    %774 = vmatpush1.msra.mxu0 0.0
    %775 = vmatprep.subr.mxu0 0.0
    %776 = vmatpush1.msra.mxu0 0.0
    %777 = vmatprep.subr.mxu0 0.0
    %778 = vmatpush1.msra.mxu0 0.0
    %779 = vmatprep.subr.mxu0 0.0
    %780 = vmatpush1.msra.mxu0 0.0
    %781 = vmatprep.subr.mxu0 0.0
    %782 = vmatpush1.msra.mxu0 0.0
    %783 = vmatprep.subr.mxu0 0.0
    %784 = vmatpush1.msra.mxu0 0.0
    %785 = vmatprep.subr.mxu0 0.0
    %786 = vmatpush1.msra.mxu0 0.0
    %787 = vmatprep.subr.mxu0 0.0
    %788 = vmatpush1.msra.mxu0 0.0
    %789 = vmatprep.subr.mxu0 0.0
    %790 = vmatpush1.msra.mxu0 0.0
    %791 = vmatprep.mubr.f32.mxu0 0.0
    %792 = vmatmul.mubr.f32.gmra.mrb[0].mxu0 %v716
    %v793 = vpop.f32.mrb[0].mxu0
    %v794 = vadd.f32 %v713, %v793
    %v795 = vpop.f32.mrb[0].mxu0
    %796 = vmatprep.mubr.f32.mxu0 0.0
    %797 = vmatmul.mubr.f32.gmra.mrb[0].mxu0 %v719
    %v798 = vpop.f32.mrb[0].mxu0
    %v799 = vadd.f32 %v713, %v798
    %v800 = vpop.f32.mrb[0].mxu0
    %801 = vmatprep.mubr.f32.mxu0 0.0
    %802 = vmatmul.mubr.f32.gmra.mrb[0].mxu0 %v722
    %v803 = vpop.f32.mrb[0].mxu0
    %v804 = vadd.f32 %v713, %v803
    %v805 = vpop.f32.mrb[0].mxu0
    %806 = vmatprep.mubr.f32.mxu0 0.0
    %807 = vmatmul.mubr.f32.gmra.mrb[0].mxu0 %v725
    %v808 = vpop.f32.mrb[0].mxu0
    %v809 = vadd.f32 %v713, %v808
    %v810 = vpop.f32.mrb[0].mxu0
    %811 = vdwg.mxu0
    %v812 = vld [vmem:[%s5 + $0x1] sm:$0x1]
    %v813 = vld [vmem:[%s5 + $0x2] sm:$0x1]
    %v814 = vmul.f32 %v794, %v794
    %v815 = vmul.f32 %v799, %v799
    %v816 = vmul.f32 %v804, %v804
    %v817 = vmul.f32 %v809, %v809
    %822 = vrot.lane.b32.xlu0 %v814, 32
    %v823 = vpop.permute.xlu0 %822
    %824 = vrot.lane.b32.xlu0 %v815, 32
    %v825 = vpop.permute.xlu0 %824
    %826 = vrot.lane.b32.xlu0 %v816, 32
    %v827 = vpop.permute.xlu0 %826
    %828 = vrot.lane.b32.xlu0 %v817, 32
    %v829 = vpop.permute.xlu0 %828
    %v834 = vsel %vm306, %v794, %v823
    %v835 = vsel %vm306, %v799, %v825
    %v836 = vsel %vm306, %v804, %v827
    %v837 = vsel %vm306, %v809, %v829
    %838 = vmatprep.subr.mxu0 0.0
    %839 = vmatpush1.msra.mxu0 %v834
    %840 = vmatprep.subr.mxu0 0.0
    %841 = vmatpush1.msra.mxu0 %v835
    %842 = vmatprep.subr.mxu0 0.0
    %843 = vmatpush1.msra.mxu0 %v836
    %844 = vmatprep.subr.mxu0 0.0
    %845 = vmatpush1.msra.mxu0 %v837
    %846 = vmatprep.subr.mxu0 0.0
    %847 = vmatpush1.msra.mxu0 0.0
    %848 = vmatprep.subr.mxu0 0.0
    %849 = vmatpush1.msra.mxu0 0.0
    %850 = vmatprep.subr.mxu0 0.0
    %851 = vmatpush1.msra.mxu0 0.0
    %852 = vmatprep.subr.mxu0 0.0
    %853 = vmatpush1.msra.mxu0 0.0
    %854 = vmatprep.subr.mxu0 0.0
    %855 = vmatpush1.msra.mxu0 0.0
    %856 = vmatprep.subr.mxu0 0.0
    %857 = vmatpush1.msra.mxu0 0.0
    %858 = vmatprep.subr.mxu0 0.0
    %859 = vmatpush1.msra.mxu0 0.0
    %860 = vmatprep.subr.mxu0 0.0
    %861 = vmatpush1.msra.mxu0 0.0
    %862 = vmatprep.subr.mxu0 0.0
    %863 = vmatpush1.msra.mxu0 0.0
    %864 = vmatprep.subr.mxu0 0.0
    %865 = vmatpush1.msra.mxu0 0.0
    %866 = vmatprep.subr.mxu0 0.0
    %867 = vmatpush1.msra.mxu0 0.0
    %868 = vmatprep.subr.mxu0 0.0
    %869 = vmatpush1.msra.mxu0 0.0
    %870 = vmatprep.subr.mxu0 0.0
    %871 = vmatpush1.msra.mxu0 0.0
    %872 = vmatprep.subr.mxu0 0.0
    %873 = vmatpush1.msra.mxu0 0.0
    %874 = vmatprep.subr.mxu0 0.0
    %875 = vmatpush1.msra.mxu0 0.0
    %876 = vmatprep.subr.mxu0 0.0
    %877 = vmatpush1.msra.mxu0 0.0
    %878 = vmatprep.subr.mxu0 0.0
    %879 = vmatpush1.msra.mxu0 0.0
    %880 = vmatprep.subr.mxu0 0.0
    %881 = vmatpush1.msra.mxu0 0.0
    %882 = vmatprep.subr.mxu0 0.0
    %883 = vmatpush1.msra.mxu0 0.0
    %884 = vmatprep.subr.mxu0 0.0
    %885 = vmatpush1.msra.mxu0 0.0
    %886 = vmatprep.subr.mxu0 0.0
    %887 = vmatpush1.msra.mxu0 0.0
    %888 = vmatprep.subr.mxu0 0.0
    %889 = vmatpush1.msra.mxu0 0.0
    %890 = vmatprep.subr.mxu0 0.0
    %891 = vmatpush1.msra.mxu0 0.0
    %892 = vmatprep.subr.mxu0 0.0
    %893 = vmatpush1.msra.mxu0 0.0
    %894 = vmatprep.subr.mxu0 0.0
    %895 = vmatpush1.msra.mxu0 0.0
    %896 = vmatprep.subr.mxu0 0.0
    %897 = vmatpush1.msra.mxu0 0.0
    %898 = vmatprep.subr.mxu0 0.0
    %899 = vmatpush1.msra.mxu0 0.0
    %900 = vmatprep.subr.mxu0 0.0
    %901 = vmatpush1.msra.mxu0 0.0
    %902 = vmatprep.mubr.f32.mxu0 0.0
    %903 = vmatmul.mubr.f32.gmra.mrb[0].mxu0 %v308
    %v904 = vpop.f32.mrb[0].mxu0
    %v905 = vadd.f32 0.0, %v904
    %v906 = vpop.f32.mrb[0].mxu0
    %907 = vdwg.mxu0
    %v908 = vld [vmem:[%s6] sm:$0xff]
    %v909 = vld [vmem:[%s6 + $0x8] sm:$0xff]
    %v910 = vld [vmem:[%s6 + $0x10] sm:$0xff]
    %v911 = vld [vmem:[%s6 + $0x18] sm:$0xff]
    %v912 = vld [vmem:[%s6 + $0x20] sm:$0xff]
    %v913 = vld [vmem:[%s6 + $0x28] sm:$0xff]
    %v914 = vld [vmem:[%s6 + $0x30] sm:$0xff]
    %v915 = vld [vmem:[%s6 + $0x38] sm:$0xff]
    %vm916 = vcmask 523264
    %v918 = vsel %vm916, %v905, 0
    %920 = vmatprep.subr.mxu0 0.0
    %921 = vmatpush1.msra.mxu0 %v908
    %922 = vmatprep.subr.mxu0 0.0
    %923 = vmatpush1.msra.mxu0 %v909
    %924 = vmatprep.subr.mxu0 0.0
    %925 = vmatpush1.msra.mxu0 %v910
    %926 = vmatprep.subr.mxu0 0.0
    %927 = vmatpush1.msra.mxu0 %v911
    %928 = vmatprep.subr.mxu0 0.0
    %929 = vmatpush1.msra.mxu0 %v912
    %930 = vmatprep.subr.mxu0 0.0
    %931 = vmatpush1.msra.mxu0 %v913
    %932 = vmatprep.subr.mxu0 0.0
    %933 = vmatpush1.msra.mxu0 %v914
    %934 = vmatprep.subr.mxu0 0.0
    %935 = vmatpush1.msra.mxu0 %v915
    %936 = vmatprep.subr.mxu0 0.0
    %937 = vmatpush1.msra.mxu0 0.0
    %938 = vmatprep.subr.mxu0 0.0
    %939 = vmatpush1.msra.mxu0 0.0
    %940 = vmatprep.subr.mxu0 0.0
    %941 = vmatpush1.msra.mxu0 0.0
    %942 = vmatprep.subr.mxu0 0.0
    %943 = vmatpush1.msra.mxu0 0.0
    %944 = vmatprep.subr.mxu0 0.0
    %945 = vmatpush1.msra.mxu0 0.0
    %946 = vmatprep.subr.mxu0 0.0
    %947 = vmatpush1.msra.mxu0 0.0
    %948 = vmatprep.subr.mxu0 0.0
    %949 = vmatpush1.msra.mxu0 0.0
    %950 = vmatprep.subr.mxu0 0.0
    %951 = vmatpush1.msra.mxu0 0.0
    %952 = vmatprep.subr.mxu0 0.0
    %953 = vmatpush1.msra.mxu0 0.0
    %954 = vmatprep.subr.mxu0 0.0
    %955 = vmatpush1.msra.mxu0 0.0
    %956 = vmatprep.subr.mxu0 0.0
    %957 = vmatpush1.msra.mxu0 0.0
    %958 = vmatprep.subr.mxu0 0.0
    %959 = vmatpush1.msra.mxu0 0.0
    %960 = vmatprep.subr.mxu0 0.0
    %961 = vmatpush1.msra.mxu0 0.0
    %962 = vmatprep.subr.mxu0 0.0
    %963 = vmatpush1.msra.mxu0 0.0
    %964 = vmatprep.subr.mxu0 0.0
    %965 = vmatpush1.msra.mxu0 0.0
    %966 = vmatprep.subr.mxu0 0.0
    %967 = vmatpush1.msra.mxu0 0.0
    %968 = vmatprep.subr.mxu0 0.0
    %969 = vmatpush1.msra.mxu0 0.0
    %970 = vmatprep.subr.mxu0 0.0
    %971 = vmatpush1.msra.mxu0 0.0
    %972 = vmatprep.subr.mxu0 0.0
    %973 = vmatpush1.msra.mxu0 0.0
    %974 = vmatprep.subr.mxu0 0.0
    %975 = vmatpush1.msra.mxu0 0.0
    %976 = vmatprep.subr.mxu0 0.0
    %977 = vmatpush1.msra.mxu0 0.0
    %978 = vmatprep.subr.mxu0 0.0
    %979 = vmatpush1.msra.mxu0 0.0
    %980 = vmatprep.subr.mxu0 0.0
    %981 = vmatpush1.msra.mxu0 0.0
    %982 = vmatprep.subr.mxu0 0.0
    %983 = vmatpush1.msra.mxu0 0.0
    %984 = vmatprep.mubr.f32.mxu0 0.0
    %985 = vmatmul.mubr.f32.gmra.mrb[0].mxu0 %v918
    %v986 = vpop.f32.mrb[0].mxu0
    %v987 = vadd.f32 0.0, %v986
    %v988 = vpop.f32.mrb[0].mxu0
    %989 = vdwg.mxu0
    %v990 = vmul.f32 %v987, %v987
    %992 = vrot.lane.b32.xlu0 %v990, 32
    %v993 = vpop.permute.xlu0 %992
    %v995 = vsub.f32 %v987, %v993
    %v996 = vadd.f32 %v995, 1e-05
    %v997 = vrsqrt.pop %v996
    %v998 = vlaneseq
    %v999 = vshrl.u32 %v998, 7
    %v1000 = vsub.s32 0, %v999
    %v1001 = vrot.slane %v812, %v1000
    %1003 = vrot.lane.b32.xlu0 %v1001, 32
    %v1004 = vpop.permute.xlu0 %1003
    %v1006 = vmul.f32 %v997, %v1004
    %1008 = vrot.lane.b32.xlu0 %v1006, 96
    %v1009 = vpop.permute.xlu0 %1008
    %v1011 = vmul.f32 %v987, %v1009
    %v1012 = vlaneseq
    %v1013 = vshrl.u32 %v1012, 7
    %v1014 = vsub.s32 0, %v1013
    %v1015 = vrot.slane %v813, %v1014
    %v1016 = vsub.f32 %v1015, %v1011
    %1018 = vrot.lane.b32.xlu0 %v1016, 32
    %v1019 = vpop.permute.xlu0 %1018
    %v1021 = vsel %vm306, %v1009, %v1019
    %v1023 = vsel %vm506, %v1021, 0
    %1025 = vmatprep.subr.mxu0 0.0
    %1026 = vmatpush1.msra.mxu0 %v1023
    %1027 = vmatprep.subr.mxu0 0.0
    %1028 = vmatpush1.msra.mxu0 0.0
    %1029 = vmatprep.subr.mxu0 0.0
    %1030 = vmatpush1.msra.mxu0 0.0
    %1031 = vmatprep.subr.mxu0 0.0
    %1032 = vmatpush1.msra.mxu0 0.0
    %1033 = vmatprep.subr.mxu0 0.0
    %1034 = vmatpush1.msra.mxu0 0.0
    %1035 = vmatprep.subr.mxu0 0.0
    %1036 = vmatpush1.msra.mxu0 0.0
    %1037 = vmatprep.subr.mxu0 0.0
    %1038 = vmatpush1.msra.mxu0 0.0
    %1039 = vmatprep.subr.mxu0 0.0
    %1040 = vmatpush1.msra.mxu0 0.0
    %1041 = vmatprep.subr.mxu0 0.0
    %1042 = vmatpush1.msra.mxu0 0.0
    %1043 = vmatprep.subr.mxu0 0.0
    %1044 = vmatpush1.msra.mxu0 0.0
    %1045 = vmatprep.subr.mxu0 0.0
    %1046 = vmatpush1.msra.mxu0 0.0
    %1047 = vmatprep.subr.mxu0 0.0
    %1048 = vmatpush1.msra.mxu0 0.0
    %1049 = vmatprep.subr.mxu0 0.0
    %1050 = vmatpush1.msra.mxu0 0.0
    %1051 = vmatprep.subr.mxu0 0.0
    %1052 = vmatpush1.msra.mxu0 0.0
    %1053 = vmatprep.subr.mxu0 0.0
    %1054 = vmatpush1.msra.mxu0 0.0
    %1055 = vmatprep.subr.mxu0 0.0
    %1056 = vmatpush1.msra.mxu0 0.0
    %1057 = vmatprep.subr.mxu0 0.0
    %1058 = vmatpush1.msra.mxu0 0.0
    %1059 = vmatprep.subr.mxu0 0.0
    %1060 = vmatpush1.msra.mxu0 0.0
    %1061 = vmatprep.subr.mxu0 0.0
    %1062 = vmatpush1.msra.mxu0 0.0
    %1063 = vmatprep.subr.mxu0 0.0
    %1064 = vmatpush1.msra.mxu0 0.0
    %1065 = vmatprep.subr.mxu0 0.0
    %1066 = vmatpush1.msra.mxu0 0.0
    %1067 = vmatprep.subr.mxu0 0.0
    %1068 = vmatpush1.msra.mxu0 0.0
    %1069 = vmatprep.subr.mxu0 0.0
    %1070 = vmatpush1.msra.mxu0 0.0
    %1071 = vmatprep.subr.mxu0 0.0
    %1072 = vmatpush1.msra.mxu0 0.0
    %1073 = vmatprep.subr.mxu0 0.0
    %1074 = vmatpush1.msra.mxu0 0.0
    %1075 = vmatprep.subr.mxu0 0.0
    %1076 = vmatpush1.msra.mxu0 0.0
    %1077 = vmatprep.subr.mxu0 0.0
    %1078 = vmatpush1.msra.mxu0 0.0
    %1079 = vmatprep.subr.mxu0 0.0
    %1080 = vmatpush1.msra.mxu0 0.0
    %1081 = vmatprep.subr.mxu0 0.0
    %1082 = vmatpush1.msra.mxu0 0.0
    %1083 = vmatprep.subr.mxu0 0.0
    %1084 = vmatpush1.msra.mxu0 0.0
    %1085 = vmatprep.subr.mxu0 0.0
    %1086 = vmatpush1.msra.mxu0 0.0
    %1087 = vmatprep.subr.mxu0 0.0
    %1088 = vmatpush1.msra.mxu0 0.0
    %1089 = vmatprep.mubr.f32.mxu0 0.0
    %1090 = vmatmul.mubr.f32.gmra.mrb[0].mxu0 %v495
    %v1091 = vpop.f32.mrb[0].mxu0
    %v1092 = vadd.f32 0.0, %v1091
    %v1093 = vpop.f32.mrb[0].mxu0
    %1094 = vmatprep.mubr.f32.mxu0 0.0
    %1095 = vmatmul.mubr.f32.gmra.mrb[0].mxu0 %v498
    %v1096 = vpop.f32.mrb[0].mxu0
    %v1097 = vadd.f32 0.0, %v1096
    %v1098 = vpop.f32.mrb[0].mxu0
    %1099 = vmatprep.mubr.f32.mxu0 0.0
    %1100 = vmatmul.mubr.f32.gmra.mrb[0].mxu0 %v501
    %v1101 = vpop.f32.mrb[0].mxu0
    %v1102 = vadd.f32 0.0, %v1101
    %v1103 = vpop.f32.mrb[0].mxu0
    %1104 = vmatprep.mubr.f32.mxu0 0.0
    %1105 = vmatmul.mubr.f32.gmra.mrb[0].mxu0 %v504
    %v1106 = vpop.f32.mrb[0].mxu0
    %v1107 = vadd.f32 0.0, %v1106
    %v1108 = vpop.f32.mrb[0].mxu0
    %1109 = vdwg.mxu0
    %v1110 = vmul.f32 %v794, %v1092
    %v1111 = vmul.f32 %v799, %v1097
    %v1112 = vmul.f32 %v804, %v1102
    %v1113 = vmul.f32 %v809, %v1107
    %1118 = vrot.lane.b32.xlu0 %v1092, 96
    %v1119 = vpop.permute.xlu0 %1118
    %1120 = vrot.lane.b32.xlu0 %v1097, 96
    %v1121 = vpop.permute.xlu0 %1120
    %1122 = vrot.lane.b32.xlu0 %v1102, 96
    %v1123 = vpop.permute.xlu0 %1122
    %1124 = vrot.lane.b32.xlu0 %v1107, 96
    %v1125 = vpop.permute.xlu0 %1124
    %v1130 = vadd.f32 %v1110, %v1119
    %v1131 = vadd.f32 %v1111, %v1121
    %v1132 = vadd.f32 %v1112, %v1123
    %v1133 = vadd.f32 %v1113, %v1125
    %vm1134 = vcmp.gt.f32.partialorder %v1130, 0.0
    %vm1135 = vcmp.gt.f32.partialorder %v1131, 0.0
    %vm1136 = vcmp.gt.f32.partialorder %v1132, 0.0
    %vm1137 = vcmp.gt.f32.partialorder %v1133, 0.0
    %v1138 = vmul.f32 %v1130, 1.442695
    %v1139 = vpow.pop %v1138
    %v1140 = vmul.f32 %v1131, 1.442695
    %v1141 = vpow.pop %v1140
    %v1142 = vmul.f32 %v1132, 1.442695
    %v1143 = vpow.pop %v1142
    %v1144 = vmul.f32 %v1133, 1.442695
    %v1145 = vpow.pop %v1144
    %v1146 = vsub.f32 %v1139, 1.0
    %v1147 = vsub.f32 %v1141, 1.0
    %v1148 = vsub.f32 %v1143, 1.0
    %v1149 = vsub.f32 %v1145, 1.0
    %v1150 = vsel %vm1134, %v1130, %v1146
    %v1151 = vsel %vm1135, %v1131, %v1147
    %v1152 = vsel %vm1136, %v1132, %v1148
    %v1153 = vsel %vm1137, %v1133, %v1149
    %v1154 = vld [vmem:[%s9] sm:$0xff]
    %v1156 = vsel %vm300, %v1154, 0
    %1158 = vmatprep.subr.mxu0 0.0
    %1159 = vmatpush1.msra.mxu0 %v1150
    %1160 = vmatprep.subr.mxu0 0.0
    %1161 = vmatpush1.msra.mxu0 %v1151
    %1162 = vmatprep.subr.mxu0 0.0
    %1163 = vmatpush1.msra.mxu0 0.0
    %1164 = vmatprep.subr.mxu0 0.0
    %1165 = vmatpush1.msra.mxu0 0.0
    %1166 = vmatprep.subr.mxu0 0.0
    %1167 = vmatpush1.msra.mxu0 0.0
    %1168 = vmatprep.subr.mxu0 0.0
    %1169 = vmatpush1.msra.mxu0 0.0
    %1170 = vmatprep.subr.mxu0 0.0
    %1171 = vmatpush1.msra.mxu0 0.0
    %1172 = vmatprep.subr.mxu0 0.0
    %1173 = vmatpush1.msra.mxu0 0.0
    %1174 = vmatprep.subr.mxu0 0.0
    %1175 = vmatpush1.msra.mxu0 0.0
    %1176 = vmatprep.subr.mxu0 0.0
    %1177 = vmatpush1.msra.mxu0 0.0
    %1178 = vmatprep.subr.mxu0 0.0
    %1179 = vmatpush1.msra.mxu0 0.0
    %1180 = vmatprep.subr.mxu0 0.0
    %1181 = vmatpush1.msra.mxu0 0.0
    %1182 = vmatprep.subr.mxu0 0.0
    %1183 = vmatpush1.msra.mxu0 0.0
    %1184 = vmatprep.subr.mxu0 0.0
    %1185 = vmatpush1.msra.mxu0 0.0
    %1186 = vmatprep.subr.mxu0 0.0
    %1187 = vmatpush1.msra.mxu0 0.0
    %1188 = vmatprep.subr.mxu0 0.0
    %1189 = vmatpush1.msra.mxu0 0.0
    %1190 = vmatprep.subr.mxu0 0.0
    %1191 = vmatpush1.msra.mxu0 0.0
    %1192 = vmatprep.subr.mxu0 0.0
    %1193 = vmatpush1.msra.mxu0 0.0
    %1194 = vmatprep.subr.mxu0 0.0
    %1195 = vmatpush1.msra.mxu0 0.0
    %1196 = vmatprep.subr.mxu0 0.0
    %1197 = vmatpush1.msra.mxu0 0.0
    %1198 = vmatprep.subr.mxu0 0.0
    %1199 = vmatpush1.msra.mxu0 0.0
    %1200 = vmatprep.subr.mxu0 0.0
    %1201 = vmatpush1.msra.mxu0 0.0
    %1202 = vmatprep.subr.mxu0 0.0
    %1203 = vmatpush1.msra.mxu0 0.0
    %1204 = vmatprep.subr.mxu0 0.0
    %1205 = vmatpush1.msra.mxu0 0.0
    %1206 = vmatprep.subr.mxu0 0.0
    %1207 = vmatpush1.msra.mxu0 0.0
    %1208 = vmatprep.subr.mxu0 0.0
    %1209 = vmatpush1.msra.mxu0 0.0
    %1210 = vmatprep.subr.mxu0 0.0
    %1211 = vmatpush1.msra.mxu0 0.0
    %1212 = vmatprep.subr.mxu0 0.0
    %1213 = vmatpush1.msra.mxu0 0.0
    %1214 = vmatprep.subr.mxu0 0.0
    %1215 = vmatpush1.msra.mxu0 0.0
    %1216 = vmatprep.subr.mxu0 0.0
    %1217 = vmatpush1.msra.mxu0 0.0
    %1218 = vmatprep.subr.mxu0 0.0
    %1219 = vmatpush1.msra.mxu0 0.0
    %1220 = vmatprep.subr.mxu0 0.0
    %1221 = vmatpush1.msra.mxu0 0.0
    %1222 = vmatprep.mubr.f32.mxu0 0.0
    %1223 = vmatmul.mubr.f32.gmra.mrb[0].mxu0 %v1156
    %v1224 = vpop.f32.mrb[0].mxu0
    %v1225 = vadd.f32 0.0, %v1224
    %v1226 = vpop.f32.mrb[0].mxu0
    %1227 = vdwg.mxu0
    %1228 = vmatprep.subr.mxu0 0.0
    %1229 = vmatpush1.msra.mxu0 %v1152
    %1230 = vmatprep.subr.mxu0 0.0
    %1231 = vmatpush1.msra.mxu0 %v1153
    %1232 = vmatprep.subr.mxu0 0.0
    %1233 = vmatpush1.msra.mxu0 0.0
    %1234 = vmatprep.subr.mxu0 0.0
    %1235 = vmatpush1.msra.mxu0 0.0
    %1236 = vmatprep.subr.mxu0 0.0
    %1237 = vmatpush1.msra.mxu0 0.0
    %1238 = vmatprep.subr.mxu0 0.0
    %1239 = vmatpush1.msra.mxu0 0.0
    %1240 = vmatprep.subr.mxu0 0.0
    %1241 = vmatpush1.msra.mxu0 0.0
    %1242 = vmatprep.subr.mxu0 0.0
    %1243 = vmatpush1.msra.mxu0 0.0
    %1244 = vmatprep.subr.mxu0 0.0
    %1245 = vmatpush1.msra.mxu0 0.0
    %1246 = vmatprep.subr.mxu0 0.0
    %1247 = vmatpush1.msra.mxu0 0.0
    %1248 = vmatprep.subr.mxu0 0.0
    %1249 = vmatpush1.msra.mxu0 0.0
    %1250 = vmatprep.subr.mxu0 0.0
    %1251 = vmatpush1.msra.mxu0 0.0
    %1252 = vmatprep.subr.mxu0 0.0
    %1253 = vmatpush1.msra.mxu0 0.0
    %1254 = vmatprep.subr.mxu0 0.0
    %1255 = vmatpush1.msra.mxu0 0.0
    %1256 = vmatprep.subr.mxu0 0.0
    %1257 = vmatpush1.msra.mxu0 0.0
    %1258 = vmatprep.subr.mxu0 0.0
    %1259 = vmatpush1.msra.mxu0 0.0
    %1260 = vmatprep.subr.mxu0 0.0
    %1261 = vmatpush1.msra.mxu0 0.0
    %1262 = vmatprep.subr.mxu0 0.0
    %1263 = vmatpush1.msra.mxu0 0.0
    %1264 = vmatprep.subr.mxu0 0.0
    %1265 = vmatpush1.msra.mxu0 0.0
    %1266 = vmatprep.subr.mxu0 0.0
    %1267 = vmatpush1.msra.mxu0 0.0
    %1268 = vmatprep.subr.mxu0 0.0
    %1269 = vmatpush1.msra.mxu0 0.0
    %1270 = vmatprep.subr.mxu0 0.0
    %1271 = vmatpush1.msra.mxu0 0.0
    %1272 = vmatprep.subr.mxu0 0.0
    %1273 = vmatpush1.msra.mxu0 0.0
    %1274 = vmatprep.subr.mxu0 0.0
    %1275 = vmatpush1.msra.mxu0 0.0
    %1276 = vmatprep.subr.mxu0 0.0
    %1277 = vmatpush1.msra.mxu0 0.0
    %1278 = vmatprep.subr.mxu0 0.0
    %1279 = vmatpush1.msra.mxu0 0.0
    %1280 = vmatprep.subr.mxu0 0.0
    %1281 = vmatpush1.msra.mxu0 0.0
    %1282 = vmatprep.subr.mxu0 0.0
    %1283 = vmatpush1.msra.mxu0 0.0
    %1284 = vmatprep.subr.mxu0 0.0
    %1285 = vmatpush1.msra.mxu0 0.0
    %1286 = vmatprep.subr.mxu0 0.0
    %1287 = vmatpush1.msra.mxu0 0.0
    %1288 = vmatprep.subr.mxu0 0.0
    %1289 = vmatpush1.msra.mxu0 0.0
    %1290 = vmatprep.subr.mxu0 0.0
    %1291 = vmatpush1.msra.mxu0 0.0
    %1292 = vmatprep.mubr.f32.mxu0 0.0
    %1293 = vmatmul.mubr.f32.gmra.mrb[0].mxu0 %v1156
    %v1294 = vpop.f32.mrb[0].mxu0
    %v1295 = vadd.f32 0.0, %v1294
    %v1296 = vpop.f32.mrb[0].mxu0
    %1297 = vdwg.mxu0
    %1298 = vst.msk [vmem:[#allocation2] sm:$0xff] %vm306, %v1225
    %1299 = vst.msk [vmem:[#allocation2 + $0x8] sm:$0xff] %vm306, %v1295
    // Predicated region
    $region42: #{tpu_custom_call.1} parent=1 // pred_check
      _
    $region43: #{tpu_custom_call.1} parent=1 // pred_check_branch
      %1301 = sbr.rel (0) target = $region45
    $region44: #{tpu_custom_call.1} parent=1 // pred_region
      %s1303 = ssub.s32 256, 256
      %1304 = vsyncadd [#allocation3], %s1303
      %s1305 = sshll.u32 [#allocation2], 4
      %s1306 = int_to_ptr.vmem [resolvable:$true] %s1305
      %1311 = dma.vmem_to_hbm [thread:$0]  %s1306, 256, %s10, [#allocation3], 128, 128, 8
    $region45: #{tpu_custom_call.1} parent=1 // pred_fallthru
      _
    // Predicated region
    $region46: #{tpu_custom_call.1} parent=1 // pred_check
      _
    $region47: #{tpu_custom_call.1} parent=1 // pred_check_branch
      %1313 = sbr.rel (0) target = $region49
    $region48: #{tpu_custom_call.1} parent=1 // pred_region
      %1314 = dma.done [#allocation3], 256
    $region49: #{tpu_custom_call.1} parent=1 // pred_fallthru
      _
    %1315 = vsyncpa [#allocation3], 1

</llo_original>
